<compile_context>
chip_gen: v6e
topology: v6e:2x2x1
jax: 0.10.0
libtpu: 0.0.40
codegen_flags: <defaults>
</compile_context>

<pallas_src>
import functools

import jax
import jax.numpy as jnp
from jax import lax
from jax.experimental import pallas as pl
from jax.experimental.pallas import tpu as pltpu


# ----------------------------------------------------------------------------
# Pallas kernels
# ----------------------------------------------------------------------------
def _conv_mfm_kernel(x_ref, w_ref, b_ref, o_ref, *, kh, kw, cout, th, wo):
    """Fused conv (stride 1) + Max-Feature-Map for one (batch, row-tile) cell.

    x_ref : (1, HP, WP, Cin)      padded NHWC image (bf16), resident across row tiles
    w_ref : (kh*kw, Cin, 2*cout)  conv taps (bf16) — both MFM halves concatenated
    b_ref : (1, 2*cout)           bias (f32)
    o_ref : (1, th, wo, cout)     MFM output rows for this tile (f32)
    """
    cin = x_ref.shape[3]
    t = pl.program_id(1)
    row0 = t * th
    if th % 8 == 0:
        row0 = pl.multiple_of(row0, 8)

    acc = jnp.zeros((th * wo, 2 * cout), jnp.float32)
    # In-kernel im2col: accumulate kh*kw shifted matmuls against the resident
    # padded tile.  Single 2*cout-wide matmul per tap (both halves at once).
    for dy in range(kh):
        for dx in range(kw):
            patch = x_ref[0, pl.ds(row0 + dy, th), dx:dx + wo, :]   # (th, wo, cin)
            acc += jnp.dot(patch.reshape(th * wo, cin), w_ref[dy * kw + dx],
                           preferred_element_type=jnp.float32)

    acc = acc + b_ref[...]                                  # bias add in f32
    out = jnp.maximum(acc[:, :cout], acc[:, cout:])         # Max-Feature-Map
    o_ref[0] = out.reshape(th, wo, cout).astype(o_ref.dtype)


def _linear_mfm_kernel(x_ref, w_ref, b_ref, o_ref, *, cout):
    """Linear(F, 2*cout) + MFM.  Single matmul, split columns, max."""
    acc = jnp.dot(x_ref[...], w_ref[...], preferred_element_type=jnp.float32)
    acc = acc + b_ref[...]
    o_ref[...] = jnp.maximum(acc[:, :cout], acc[:, cout:]).astype(o_ref.dtype)


# ----------------------------------------------------------------------------
# Wrappers
# ----------------------------------------------------------------------------
def mfm_conv(x, w, b, *, stride=1, padding=1, row_tile=64):
    """mfm type=1.  x:(B,Cin,H,W) NCHW f32, w:(2*Cout,Cin,kh,kw) OIHW, b:(2*Cout,).
    Returns (B,Cout,Ho,Wo) NCHW f32."""
    # TODO(synk): stride > 1 not implemented (module default / LCNN usage is stride=1).
    assert stride == 1
    B, Cin, H, W = x.shape
    C2, _, kh, kw = w.shape
    cout = C2 // 2
    p = padding

    Ho = H + 2 * p - kh + 1
    Wo = W + 2 * p - kw + 1
    th = min(row_tile, Ho)
    nt = -(-Ho // th)
    Ho_pad = nt * th

    # NHWC; zero pad (symmetric conv pad + extra bottom rows so the last row
    # tile is full).  bf16 dot operands.
    x_nhwc = jnp.transpose(x, (0, 2, 3, 1))
    xp = jnp.pad(x_nhwc, ((0, 0), (p, p + (Ho_pad - Ho)), (p, p), (0, 0)))
    xp = xp.astype(jnp.bfloat16)
    HP, WP = xp.shape[1], xp.shape[2]

    # (kh*kw, Cin, 2*Cout): both MFM halves stay concatenated -> one wide matmul.
    wt = jnp.transpose(w, (2, 3, 1, 0)).reshape(kh * kw, Cin, C2).astype(jnp.bfloat16)
    bt = b.reshape(1, C2).astype(jnp.float32)

    kernel = functools.partial(_conv_mfm_kernel, kh=kh, kw=kw, cout=cout, th=th, wo=Wo)
    out = pl.pallas_call(
        kernel,
        out_shape=jax.ShapeDtypeStruct((B, Ho_pad, Wo, cout), jnp.float32),
        grid=(B, nt),
        in_specs=[
            pl.BlockSpec((1, HP, WP, Cin), lambda bi, ti: (bi, 0, 0, 0)),
            pl.BlockSpec((kh * kw, Cin, C2), lambda bi, ti: (0, 0, 0)),
            pl.BlockSpec((1, C2), lambda bi, ti: (0, 0)),
        ],
        out_specs=pl.BlockSpec((1, th, Wo, cout), lambda bi, ti: (bi, ti, 0, 0)),
        compiler_params=pltpu.CompilerParams(
            dimension_semantics=("parallel", "parallel"),
            vmem_limit_bytes=64 * 1024 * 1024),
    )(xp, wt, bt)

    out = out[:, :Ho]                              # drop row-tile padding
    return jnp.transpose(out, (0, 3, 1, 2))        # back to NCHW


def mfm_linear(x, w, b):
    """mfm type=0.  x:(B,F) f32, w:(2*Cout,F) (PyTorch Linear layout), b:(2*Cout,)."""
    B, F = x.shape
    C2 = w.shape[0]
    cout = C2 // 2
    xb = x.astype(jnp.bfloat16)
    wb = jnp.transpose(w, (1, 0)).astype(jnp.bfloat16)
    bt = b.reshape(1, C2).astype(jnp.float32)
    kernel = functools.partial(_linear_mfm_kernel, cout=cout)
    return pl.pallas_call(
        kernel,
        out_shape=jax.ShapeDtypeStruct((B, cout), jnp.float32),
        grid=(1,),
        in_specs=[
            pl.BlockSpec((B, F), lambda i: (0, 0)),
            pl.BlockSpec((F, C2), lambda i: (0, 0)),
            pl.BlockSpec((1, C2), lambda i: (0, 0)),
        ],
        out_specs=pl.BlockSpec((B, cout), lambda i: (0, 0)),
        compiler_params=pltpu.CompilerParams(
            dimension_semantics=("parallel",),
            vmem_limit_bytes=64 * 1024 * 1024),
    )(xb, wb, bt)


# ----------------------------------------------------------------------------
# Plain-JAX references (f32, HIGHEST precision) for validation
# ----------------------------------------------------------------------------
def _conv_mfm_ref(x, w, b, padding):
    y = lax.conv_general_dilated(
        x, w, window_strides=(1, 1),
        padding=[(padding, padding), (padding, padding)],
        dimension_numbers=("NCHW", "OIHW", "NCHW"),
        precision=lax.Precision.HIGHEST)
    y = y + b[None, :, None, None]
    cout = w.shape[0] // 2
    return jnp.maximum(y[:, :cout], y[:, cout:])


def _linear_mfm_ref(x, w, b):
    y = jnp.dot(x, w.T, precision=lax.Precision.HIGHEST) + b
    cout = w.shape[0] // 2
    return jnp.maximum(y[:, :cout], y[:, cout:])


# ----------------------------------------------------------------------------
if __name__ == "__main__":
    key = jax.random.PRNGKey(0)
    k = jax.random.split(key, 6)

    # --- conv-type mfm (type=1): mfm(4, 16, kernel_size=3, stride=1, padding=1)
    B, Cin, H, W, Cout = 2, 4, 16, 16, 16
    x = jax.random.normal(k[0], (B, Cin, H, W), jnp.float32)
    wc = jax.random.normal(k[1], (2 * Cout, Cin, 3, 3), jnp.float32) * 0.1
    bc = jax.random.normal(k[2], (2 * Cout,), jnp.float32) * 0.1

    conv_fn = jax.jit(functools.partial(mfm_conv, stride=1, padding=1, row_tile=8))
    y = jax.block_until_ready(conv_fn(x, wc, bc))
    y_ref = _conv_mfm_ref(x, wc, bc, padding=1)
    assert y.shape == (B, Cout, H, W), y.shape
    assert bool(jnp.all(jnp.isfinite(y)))
    assert bool(jnp.allclose(y, y_ref, atol=5e-2, rtol=5e-2)), \
        float(jnp.max(jnp.abs(y - y_ref)))

    # --- linear-type mfm (type=0): mfm(32, 16, type=0)
    Fdim, Cl = 32, 16
    x2 = jax.random.normal(k[3], (B, Fdim), jnp.float32)
    wl = jax.random.normal(k[4], (2 * Cl, Fdim), jnp.float32) * 0.1
    bl = jax.random.normal(k[5], (2 * Cl,), jnp.float32) * 0.1

    y2 = jax.block_until_ready(jax.jit(mfm_linear)(x2, wl, bl))
    y2_ref = _linear_mfm_ref(x2, wl, bl)
    assert y2.shape == (B, Cl), y2.shape
    assert bool(jnp.all(jnp.isfinite(y2)))
    assert bool(jnp.allclose(y2, y2_ref, atol=5e-2, rtol=5e-2)), \
        float(jnp.max(jnp.abs(y2 - y2_ref)))

    print("KERNEL_OK")
</pallas_src>

<mosaic_0001>
module attributes {stable_mosaic.version = 11 : i64} {
  func.func @_conv_mfm_kernel(%arg0: i32, %arg1: i32, %arg2: memref<1x18x18x4xbf16, #tpu.memory_space<vmem>>, %arg3: memref<9x4x32xbf16, #tpu.memory_space<vmem>>, %arg4: memref<1x32xf32, #tpu.memory_space<vmem>>, %arg5: memref<1x8x16x16xf32, #tpu.memory_space<vmem>>) attributes {dimension_semantics = [#tpu.dimension_semantics<parallel>, #tpu.dimension_semantics<parallel>], iteration_bounds = array<i64: 2, 2>, scalar_prefetch = 0 : i64, scratch_operands = 0 : i64, tpu.core_type = #tpu.core_type<tc>, window_params = [{transform_indices = @transform_0, window_bounds = array<i64: 1, 18, 18, 4>}, {pipeline_mode = #tpu.pipeline_mode<synchronous>, transform_indices = @transform_1, window_bounds = array<i64: 9, 4, 32>}, {pipeline_mode = #tpu.pipeline_mode<synchronous>, transform_indices = @transform_2, window_bounds = array<i64: 1, 32>}, {transform_indices = @transform_3, window_bounds = array<i64: 1, 8, 16, 16>}]} {
    %c8_i32 = arith.constant 8 : i32
    %0 = arith.muli %arg1, %c8_i32 : i32
    %1 = tpu.assume_multiple %0, 8 : i32
    %cst = arith.constant 0.000000e+00 : f32
    %2 = vector.broadcast %cst : f32 to vector<128x32xf32>
    %c0_i32 = arith.constant 0 : i32
    %3 = arith.addi %1, %c0_i32 : i32
    %c0 = arith.constant 0 : index
    %4 = arith.index_cast %3 : i32 to index
    %c0_0 = arith.constant 0 : index
    %c0_1 = arith.constant 0 : index
    %5 = vector.load %arg2[%c0, %4, %c0_0, %c0_1] : memref<1x18x18x4xbf16, #tpu.memory_space<vmem>>, vector<1x8x16x4xbf16>
    %6 = vector.shape_cast %5 : vector<1x8x16x4xbf16> to vector<8x16x4xbf16>
    %7 = vector.shape_cast %6 : vector<8x16x4xbf16> to vector<128x4xbf16>
    %c0_2 = arith.constant 0 : index
    %c0_3 = arith.constant 0 : index
    %c0_4 = arith.constant 0 : index
    %8 = vector.load %arg3[%c0_2, %c0_3, %c0_4] : memref<9x4x32xbf16, #tpu.memory_space<vmem>>, vector<1x4x32xbf16>
    %9 = vector.shape_cast %8 : vector<1x4x32xbf16> to vector<4x32xbf16>
    %cst_5 = arith.constant dense<0.000000e+00> : vector<128x32xf32>
    %10 = tpu.matmul %7, %9, %cst_5 {dimension_numbers = #tpu.dot_dimension_numbers<[1], [0], [0], [1], [0, 0, 1, 1], [], []>} : vector<128x4xbf16>, vector<4x32xbf16>, vector<128x32xf32> -> vector<128x32xf32>
    %11 = arith.addf %2, %10 : vector<128x32xf32>
    %c0_i32_6 = arith.constant 0 : i32
    %12 = arith.addi %1, %c0_i32_6 : i32
    %c0_7 = arith.constant 0 : index
    %13 = arith.index_cast %12 : i32 to index
    %c1 = arith.constant 1 : index
    %c0_8 = arith.constant 0 : index
    %14 = vector.load %arg2[%c0_7, %13, %c1, %c0_8] : memref<1x18x18x4xbf16, #tpu.memory_space<vmem>>, vector<1x8x16x4xbf16>
    %15 = vector.shape_cast %14 : vector<1x8x16x4xbf16> to vector<8x16x4xbf16>
    %16 = vector.shape_cast %15 : vector<8x16x4xbf16> to vector<128x4xbf16>
    %c1_9 = arith.constant 1 : index
    %c0_10 = arith.constant 0 : index
    %c0_11 = arith.constant 0 : index
    %17 = vector.load %arg3[%c1_9, %c0_10, %c0_11] : memref<9x4x32xbf16, #tpu.memory_space<vmem>>, vector<1x4x32xbf16>
    %18 = vector.shape_cast %17 : vector<1x4x32xbf16> to vector<4x32xbf16>
    %cst_12 = arith.constant dense<0.000000e+00> : vector<128x32xf32>
    %19 = tpu.matmul %16, %18, %cst_12 {dimension_numbers = #tpu.dot_dimension_numbers<[1], [0], [0], [1], [0, 0, 1, 1], [], []>} : vector<128x4xbf16>, vector<4x32xbf16>, vector<128x32xf32> -> vector<128x32xf32>
    %20 = arith.addf %11, %19 : vector<128x32xf32>
    %c0_i32_13 = arith.constant 0 : i32
    %21 = arith.addi %1, %c0_i32_13 : i32
    %c0_14 = arith.constant 0 : index
    %22 = arith.index_cast %21 : i32 to index
    %c2 = arith.constant 2 : index
    %c0_15 = arith.constant 0 : index
    %23 = vector.load %arg2[%c0_14, %22, %c2, %c0_15] : memref<1x18x18x4xbf16, #tpu.memory_space<vmem>>, vector<1x8x16x4xbf16>
    %24 = vector.shape_cast %23 : vector<1x8x16x4xbf16> to vector<8x16x4xbf16>
    %25 = vector.shape_cast %24 : vector<8x16x4xbf16> to vector<128x4xbf16>
    %c2_16 = arith.constant 2 : index
    %c0_17 = arith.constant 0 : index
    %c0_18 = arith.constant 0 : index
    %26 = vector.load %arg3[%c2_16, %c0_17, %c0_18] : memref<9x4x32xbf16, #tpu.memory_space<vmem>>, vector<1x4x32xbf16>
    %27 = vector.shape_cast %26 : vector<1x4x32xbf16> to vector<4x32xbf16>
    %cst_19 = arith.constant dense<0.000000e+00> : vector<128x32xf32>
    %28 = tpu.matmul %25, %27, %cst_19 {dimension_numbers = #tpu.dot_dimension_numbers<[1], [0], [0], [1], [0, 0, 1, 1], [], []>} : vector<128x4xbf16>, vector<4x32xbf16>, vector<128x32xf32> -> vector<128x32xf32>
    %29 = arith.addf %20, %28 : vector<128x32xf32>
    %c1_i32 = arith.constant 1 : i32
    %30 = arith.addi %1, %c1_i32 : i32
    %c0_20 = arith.constant 0 : index
    %31 = arith.index_cast %30 : i32 to index
    %c0_21 = arith.constant 0 : index
    %c0_22 = arith.constant 0 : index
    %32 = vector.load %arg2[%c0_20, %31, %c0_21, %c0_22] : memref<1x18x18x4xbf16, #tpu.memory_space<vmem>>, vector<1x8x16x4xbf16>
    %33 = vector.shape_cast %32 : vector<1x8x16x4xbf16> to vector<8x16x4xbf16>
    %34 = vector.shape_cast %33 : vector<8x16x4xbf16> to vector<128x4xbf16>
    %c3 = arith.constant 3 : index
    %c0_23 = arith.constant 0 : index
    %c0_24 = arith.constant 0 : index
    %35 = vector.load %arg3[%c3, %c0_23, %c0_24] : memref<9x4x32xbf16, #tpu.memory_space<vmem>>, vector<1x4x32xbf16>
    %36 = vector.shape_cast %35 : vector<1x4x32xbf16> to vector<4x32xbf16>
    %cst_25 = arith.constant dense<0.000000e+00> : vector<128x32xf32>
    %37 = tpu.matmul %34, %36, %cst_25 {dimension_numbers = #tpu.dot_dimension_numbers<[1], [0], [0], [1], [0, 0, 1, 1], [], []>} : vector<128x4xbf16>, vector<4x32xbf16>, vector<128x32xf32> -> vector<128x32xf32>
    %38 = arith.addf %29, %37 : vector<128x32xf32>
    %c1_i32_26 = arith.constant 1 : i32
    %39 = arith.addi %1, %c1_i32_26 : i32
    %c0_27 = arith.constant 0 : index
    %40 = arith.index_cast %39 : i32 to index
    %c1_28 = arith.constant 1 : index
    %c0_29 = arith.constant 0 : index
    %41 = vector.load %arg2[%c0_27, %40, %c1_28, %c0_29] : memref<1x18x18x4xbf16, #tpu.memory_space<vmem>>, vector<1x8x16x4xbf16>
    %42 = vector.shape_cast %41 : vector<1x8x16x4xbf16> to vector<8x16x4xbf16>
    %43 = vector.shape_cast %42 : vector<8x16x4xbf16> to vector<128x4xbf16>
    %c4 = arith.constant 4 : index
    %c0_30 = arith.constant 0 : index
    %c0_31 = arith.constant 0 : index
    %44 = vector.load %arg3[%c4, %c0_30, %c0_31] : memref<9x4x32xbf16, #tpu.memory_space<vmem>>, vector<1x4x32xbf16>
    %45 = vector.shape_cast %44 : vector<1x4x32xbf16> to vector<4x32xbf16>
    %cst_32 = arith.constant dense<0.000000e+00> : vector<128x32xf32>
    %46 = tpu.matmul %43, %45, %cst_32 {dimension_numbers = #tpu.dot_dimension_numbers<[1], [0], [0], [1], [0, 0, 1, 1], [], []>} : vector<128x4xbf16>, vector<4x32xbf16>, vector<128x32xf32> -> vector<128x32xf32>
    %47 = arith.addf %38, %46 : vector<128x32xf32>
    %c1_i32_33 = arith.constant 1 : i32
    %48 = arith.addi %1, %c1_i32_33 : i32
    %c0_34 = arith.constant 0 : index
    %49 = arith.index_cast %48 : i32 to index
    %c2_35 = arith.constant 2 : index
    %c0_36 = arith.constant 0 : index
    %50 = vector.load %arg2[%c0_34, %49, %c2_35, %c0_36] : memref<1x18x18x4xbf16, #tpu.memory_space<vmem>>, vector<1x8x16x4xbf16>
    %51 = vector.shape_cast %50 : vector<1x8x16x4xbf16> to vector<8x16x4xbf16>
    %52 = vector.shape_cast %51 : vector<8x16x4xbf16> to vector<128x4xbf16>
    %c5 = arith.constant 5 : index
    %c0_37 = arith.constant 0 : index
    %c0_38 = arith.constant 0 : index
    %53 = vector.load %arg3[%c5, %c0_37, %c0_38] : memref<9x4x32xbf16, #tpu.memory_space<vmem>>, vector<1x4x32xbf16>
    %54 = vector.shape_cast %53 : vector<1x4x32xbf16> to vector<4x32xbf16>
    %cst_39 = arith.constant dense<0.000000e+00> : vector<128x32xf32>
    %55 = tpu.matmul %52, %54, %cst_39 {dimension_numbers = #tpu.dot_dimension_numbers<[1], [0], [0], [1], [0, 0, 1, 1], [], []>} : vector<128x4xbf16>, vector<4x32xbf16>, vector<128x32xf32> -> vector<128x32xf32>
    %56 = arith.addf %47, %55 : vector<128x32xf32>
    %c2_i32 = arith.constant 2 : i32
    %57 = arith.addi %1, %c2_i32 : i32
    %c0_40 = arith.constant 0 : index
    %58 = arith.index_cast %57 : i32 to index
    %c0_41 = arith.constant 0 : index
    %c0_42 = arith.constant 0 : index
    %59 = vector.load %arg2[%c0_40, %58, %c0_41, %c0_42] : memref<1x18x18x4xbf16, #tpu.memory_space<vmem>>, vector<1x8x16x4xbf16>
    %60 = vector.shape_cast %59 : vector<1x8x16x4xbf16> to vector<8x16x4xbf16>
    %61 = vector.shape_cast %60 : vector<8x16x4xbf16> to vector<128x4xbf16>
    %c6 = arith.constant 6 : index
    %c0_43 = arith.constant 0 : index
    %c0_44 = arith.constant 0 : index
    %62 = vector.load %arg3[%c6, %c0_43, %c0_44] : memref<9x4x32xbf16, #tpu.memory_space<vmem>>, vector<1x4x32xbf16>
    %63 = vector.shape_cast %62 : vector<1x4x32xbf16> to vector<4x32xbf16>
    %cst_45 = arith.constant dense<0.000000e+00> : vector<128x32xf32>
    %64 = tpu.matmul %61, %63, %cst_45 {dimension_numbers = #tpu.dot_dimension_numbers<[1], [0], [0], [1], [0, 0, 1, 1], [], []>} : vector<128x4xbf16>, vector<4x32xbf16>, vector<128x32xf32> -> vector<128x32xf32>
    %65 = arith.addf %56, %64 : vector<128x32xf32>
    %c2_i32_46 = arith.constant 2 : i32
    %66 = arith.addi %1, %c2_i32_46 : i32
    %c0_47 = arith.constant 0 : index
    %67 = arith.index_cast %66 : i32 to index
    %c1_48 = arith.constant 1 : index
    %c0_49 = arith.constant 0 : index
    %68 = vector.load %arg2[%c0_47, %67, %c1_48, %c0_49] : memref<1x18x18x4xbf16, #tpu.memory_space<vmem>>, vector<1x8x16x4xbf16>
    %69 = vector.shape_cast %68 : vector<1x8x16x4xbf16> to vector<8x16x4xbf16>
    %70 = vector.shape_cast %69 : vector<8x16x4xbf16> to vector<128x4xbf16>
    %c7 = arith.constant 7 : index
    %c0_50 = arith.constant 0 : index
    %c0_51 = arith.constant 0 : index
    %71 = vector.load %arg3[%c7, %c0_50, %c0_51] : memref<9x4x32xbf16, #tpu.memory_space<vmem>>, vector<1x4x32xbf16>
    %72 = vector.shape_cast %71 : vector<1x4x32xbf16> to vector<4x32xbf16>
    %cst_52 = arith.constant dense<0.000000e+00> : vector<128x32xf32>
    %73 = tpu.matmul %70, %72, %cst_52 {dimension_numbers = #tpu.dot_dimension_numbers<[1], [0], [0], [1], [0, 0, 1, 1], [], []>} : vector<128x4xbf16>, vector<4x32xbf16>, vector<128x32xf32> -> vector<128x32xf32>
    %74 = arith.addf %65, %73 : vector<128x32xf32>
    %c2_i32_53 = arith.constant 2 : i32
    %75 = arith.addi %1, %c2_i32_53 : i32
    %c0_54 = arith.constant 0 : index
    %76 = arith.index_cast %75 : i32 to index
    %c2_55 = arith.constant 2 : index
    %c0_56 = arith.constant 0 : index
    %77 = vector.load %arg2[%c0_54, %76, %c2_55, %c0_56] : memref<1x18x18x4xbf16, #tpu.memory_space<vmem>>, vector<1x8x16x4xbf16>
    %78 = vector.shape_cast %77 : vector<1x8x16x4xbf16> to vector<8x16x4xbf16>
    %79 = vector.shape_cast %78 : vector<8x16x4xbf16> to vector<128x4xbf16>
    %c8 = arith.constant 8 : index
    %c0_57 = arith.constant 0 : index
    %c0_58 = arith.constant 0 : index
    %80 = vector.load %arg3[%c8, %c0_57, %c0_58] : memref<9x4x32xbf16, #tpu.memory_space<vmem>>, vector<1x4x32xbf16>
    %81 = vector.shape_cast %80 : vector<1x4x32xbf16> to vector<4x32xbf16>
    %cst_59 = arith.constant dense<0.000000e+00> : vector<128x32xf32>
    %82 = tpu.matmul %79, %81, %cst_59 {dimension_numbers = #tpu.dot_dimension_numbers<[1], [0], [0], [1], [0, 0, 1, 1], [], []>} : vector<128x4xbf16>, vector<4x32xbf16>, vector<128x32xf32> -> vector<128x32xf32>
    %83 = arith.addf %74, %82 : vector<128x32xf32>
    %c0_60 = arith.constant 0 : index
    %c0_61 = arith.constant 0 : index
    %84 = vector.load %arg4[%c0_60, %c0_61] : memref<1x32xf32, #tpu.memory_space<vmem>>, vector<1x32xf32>
    %85 = vector.broadcast %84 : vector<1x32xf32> to vector<128x32xf32>
    %86 = arith.addf %83, %85 : vector<128x32xf32>
    %87 = vector.extract_strided_slice %86 {offsets = [0, 0], sizes = [128, 16], strides = [1, 1]} : vector<128x32xf32> to vector<128x16xf32>
    %88 = vector.extract_strided_slice %86 {offsets = [0, 16], sizes = [128, 16], strides = [1, 1]} : vector<128x32xf32> to vector<128x16xf32>
    %89 = arith.maximumf %87, %88 : vector<128x16xf32>
    %90 = vector.shape_cast %89 : vector<128x16xf32> to vector<8x16x16xf32>
    %c0_62 = arith.constant 0 : index
    %c0_63 = arith.constant 0 : index
    %c0_64 = arith.constant 0 : index
    %c0_65 = arith.constant 0 : index
    %91 = vector.load %arg5[%c0_62, %c0_63, %c0_64, %c0_65] : memref<1x8x16x16xf32, #tpu.memory_space<vmem>>, vector<1x8x16x16xf32>
    %92 = vector.shape_cast %91 : vector<1x8x16x16xf32> to vector<8x16x16xf32>
    %93 = vector.shape_cast %90 : vector<8x16x16xf32> to vector<1x8x16x16xf32>
    tpu.vector_store %arg5[%c0_62, %c0_63, %c0_64, %c0_65], %93 {strides = array<i32>} : memref<1x8x16x16xf32, #tpu.memory_space<vmem>>, vector<1x8x16x16xf32>,
    return
  }
  func.func @transform_0(%arg0: i32, %arg1: i32) -> (i32, i32, i32, i32) {
    %c0_i32 = arith.constant 0 : i32
    %c0_i32_0 = arith.constant 0 : i32
    %c0_i32_1 = arith.constant 0 : i32
    %c0_i32_2 = arith.constant 0 : i32
    return %arg0, %c0_i32, %c0_i32_0, %c0_i32_1 : i32, i32, i32, i32
  }
  func.func @transform_1(%arg0: i32, %arg1: i32) -> (i32, i32, i32) {
    %c0_i32 = arith.constant 0 : i32
    %c0_i32_0 = arith.constant 0 : i32
    %c0_i32_1 = arith.constant 0 : i32
    %c0_i32_2 = arith.constant 0 : i32
    return %c0_i32, %c0_i32_0, %c0_i32_1 : i32, i32, i32
  }
  func.func @transform_2(%arg0: i32, %arg1: i32) -> (i32, i32) {
    %c0_i32 = arith.constant 0 : i32
    %c0_i32_0 = arith.constant 0 : i32
    %c0_i32_1 = arith.constant 0 : i32
    return %c0_i32, %c0_i32_0 : i32, i32
  }
  func.func @transform_3(%arg0: i32, %arg1: i32) -> (i32, i32, i32, i32) {
    %c0_i32 = arith.constant 0 : i32
    %c0_i32_0 = arith.constant 0 : i32
    %c0_i32_1 = arith.constant 0 : i32
    return %arg0, %arg1, %c0_i32, %c0_i32_0 : i32, i32, i32, i32
  }
}

</mosaic_0001>

<llo_original>
// kernel: mfm_conv.1
$region0: #{mfm_conv.1}
  #allocation0 [shape = 'u32[]', space=smem, size = 0x4, offset = 0x4, fixed_abs, tag = 'smem constant byte address 0x4 - core index']
  #allocation1 [shape = 'u32[144,128]{1,0:T(1,128)}', space=vmem, size = 0x12000, scoped, tag = 'internal scratch']
  %s0 = inlined_call_operand.vmem [shape: bf16[2,18,18,4], index: 0, kind: input, shape index: {}]
  %s1 = inlined_call_operand.vmem [shape: bf16[9,4,32], index: 1, kind: input, shape index: {}]
  %s2 = inlined_call_operand.vmem [shape: f32[1,32], index: 2, kind: input, shape index: {}]
  %s3 = inlined_call_operand.vmem [shape: f32[2,16,16,16], index: 3, kind: output, shape index: {}]
  %s4 = sld [smem:[#allocation0]]
  $region45: #{mfm_conv.1} parent=0
    _
  %s6 = ssub.s32 1, %s4
  %s7 = scalar_select 0, %s6, %s4
  loop: start=0, step=1, limit=6
  $region2: #{mfm_conv.1} parent=0 // loop_pre_header
    _
  $region3: #{mfm_conv.1} parent=0 // loop_header
    %s9 = sphi 0, %s13
    %p10 = scmp.ge.s32.totalorder %s9, 6
    %s16 = sphi 0, %s28
    %s17 = sphi 0, %s24
    %s18 = sphi 0, %s16
    %s19 = sphi 0, %s17
    %s20 = sphi 0, %s18
    %s21 = sphi 0, %s19
    %s31 = sphi 0, %s33
    %s34 = sphi 0, %s31
    %s35 = sphi 0, %s34
    %s51 = sphi 0, %s35
    %s55 = sphi 0, %s55
    %s57 = sphi 0, %s55
    %s58 = sphi 0, %s57
    %s72 = sphi 0, %s58
    %s76 = sphi 0, %s76
    %s78 = sphi 0, %s76
    %s79 = sphi 0, %s78
    %s93 = sphi 0, %s79
    %s101 = sphi 0, %s103
    %s104 = sphi 0, %s101
    %s105 = sphi 0, %s104
    %s121 = sphi 0, %s105
  $region4: #{mfm_conv.1} parent=0 // loop_header_branch
    %12 = sbr.rel (%p10) target = $region8
  $region5: #{mfm_conv.1} parent=0 // loop_body
    %s14 = ssub.s32 %s9, 1
    %s15 = ssub.s32 %s9, 2
    %s22 = sadd.s32 1, %s17
    %p23 = scmp.ge.s32.totalorder %s22, 2
    %s24 = scalar_select %p23, 0, %s22
    %s25 = sadd.s32 1, %s16
    %s26 = scalar_select %p23, %s25, %s16
    %p27 = scmp.ge.s32.totalorder %s26, 2
    %s28 = scalar_select %p27, 0, %s26
    %s29 = ssub.s32 %s16, %s28
    %p30 = scmp.eq.s32.totalorder %s29, 0
    %s32 = sadd.s32 %s31, 1
    %s33 = scalar_select %p30, %s31, %s32
    %p36 = pneg %p30
    %p37 = scmp.eq.s32.totalorder %s9, 3
    %p38 = por %p36, %p37
    %p39 = scmp.ne.s32.totalorder %s31, %s34
    %p40 = scmp.eq.s32.totalorder %s9, 0
    %p41 = por %p39, %p40
    %p42 = scmp.ne.s32.totalorder %s31, %s34
    %p43 = scmp.eq.s32.totalorder %s14, 3
    %p44 = por %p42, %p43
    %p45 = scmp.ne.s32.totalorder %s34, %s35
    %p46 = scmp.eq.s32.totalorder %s14, 0
    %p47 = por %p45, %p46
    %p48 = scmp.ne.s32.totalorder %s34, %s35
    %p49 = scmp.eq.s32.totalorder %s15, 3
    %p50 = por %p48, %p49
    %p52 = scmp.ne.s32.totalorder %s35, %s51
    %p53 = scmp.eq.s32.totalorder %s15, 0
    %p54 = por %p52, %p53
    %s56 = sadd.s32 %s55, 1
    %p59 = scmp.eq.s32.totalorder %s9, 3
    %p60 = scmp.ne.s32.totalorder %s55, %s57
    %p61 = scmp.eq.s32.totalorder %s9, 0
    %p62 = por %p60, %p61
    %p63 = scmp.ne.s32.totalorder %s55, %s57
    %p64 = scmp.eq.s32.totalorder %s14, 3
    %p65 = por %p63, %p64
    %p66 = scmp.ne.s32.totalorder %s57, %s58
    %p67 = scmp.eq.s32.totalorder %s14, 0
    %p68 = por %p66, %p67
    %p69 = scmp.ne.s32.totalorder %s57, %s58
    %p70 = scmp.eq.s32.totalorder %s15, 3
    %p71 = por %p69, %p70
    %p73 = scmp.ne.s32.totalorder %s58, %s72
    %p74 = scmp.eq.s32.totalorder %s15, 0
    %p75 = por %p73, %p74
    %s77 = sadd.s32 %s76, 1
    %p80 = scmp.eq.s32.totalorder %s9, 3
    %p81 = scmp.ne.s32.totalorder %s76, %s78
    %p82 = scmp.eq.s32.totalorder %s9, 0
    %p83 = por %p81, %p82
    %p84 = scmp.ne.s32.totalorder %s76, %s78
    %p85 = scmp.eq.s32.totalorder %s14, 3
    %p86 = por %p84, %p85
    %p87 = scmp.ne.s32.totalorder %s78, %s79
    %p88 = scmp.eq.s32.totalorder %s14, 0
    %p89 = por %p87, %p88
    %p90 = scmp.ne.s32.totalorder %s78, %s79
    %p91 = scmp.eq.s32.totalorder %s15, 3
    %p92 = por %p90, %p91
    %p94 = scmp.ne.s32.totalorder %s79, %s93
    %p95 = scmp.eq.s32.totalorder %s15, 0
    %p96 = por %p94, %p95
    %s97 = ssub.s32 %s16, %s28
    %s98 = ssub.s32 %s17, %s24
    %s99 = sor.u32 %s97, %s98
    %p100 = scmp.eq.s32.totalorder %s99, 0
    %s102 = sadd.s32 %s101, 1
    %s103 = scalar_select %p100, %s101, %s102
    %p106 = pneg %p100
    %p107 = scmp.eq.s32.totalorder %s9, 3
    %p108 = por %p106, %p107
    %p109 = scmp.ne.s32.totalorder %s101, %s104
    %p110 = scmp.eq.s32.totalorder %s9, 0
    %p111 = por %p109, %p110
    %p112 = scmp.ne.s32.totalorder %s101, %s104
    %p113 = scmp.eq.s32.totalorder %s14, 3
    %p114 = por %p112, %p113
    %p115 = scmp.ne.s32.totalorder %s104, %s105
    %p116 = scmp.eq.s32.totalorder %s14, 0
    %p117 = por %p115, %p116
    %p118 = scmp.ne.s32.totalorder %s104, %s105
    %p119 = scmp.eq.s32.totalorder %s15, 3
    %p120 = por %p118, %p119
    %p122 = scmp.ne.s32.totalorder %s105, %s121
    %p123 = scmp.eq.s32.totalorder %s15, 0
    %p124 = por %p122, %p123
    %p125 = scmp.le.s32.totalorder 1, %s9
    %p126 = scmp.lt.s32.totalorder %s9, 5
    %p127 = pnand %p125, %p126
    %p128 = pneg %p127
    // Predicated region
    $region9: #{mfm_conv.1} parent=5 // pred_check
      _
    $region10: #{mfm_conv.1} parent=5 // pred_check_branch
      %130 = sbr.rel (%p127) target = $region12
    $region11: #{mfm_conv.1} parent=5 // pred_region
      %s131 = ssub.s32 %s9, 1
      // Predicated region
      $region13: #{mfm_conv.1} parent=11 // pred_check
        %p132 = pneg %p68
      $region14: #{mfm_conv.1} parent=11 // pred_check_branch
        %134 = sbr.rel (%p132) target = $region16
      $region15: #{mfm_conv.1} parent=11 // pred_region
        _
      $region16: #{mfm_conv.1} parent=11 // pred_fallthru
        _
      // Predicated region
      $region17: #{mfm_conv.1} parent=11 // pred_check
        %p135 = pneg %p89
      $region18: #{mfm_conv.1} parent=11 // pred_check_branch
        %137 = sbr.rel (%p135) target = $region20
      $region19: #{mfm_conv.1} parent=11 // pred_region
        _
      $region20: #{mfm_conv.1} parent=11 // pred_fallthru
        _
    $region12: #{mfm_conv.1} parent=5 // pred_fallthru
      _
    %p138 = scmp.lt.s32.totalorder %s9, 4
    // Predicated region
    $region21: #{mfm_conv.1} parent=5 // pred_check
      %p139 = pneg %p138
    $region22: #{mfm_conv.1} parent=5 // pred_check_branch
      %141 = sbr.rel (%p139) target = $region24
    $region23: #{mfm_conv.1} parent=5 // pred_region
      // Predicated region
      $region25: #{mfm_conv.1} parent=23 // pred_check
        %p142 = pneg %p41
      $region26: #{mfm_conv.1} parent=23 // pred_check_branch
        %144 = sbr.rel (%p142) target = $region28
      $region27: #{mfm_conv.1} parent=23 // pred_region
        %p145 = scmp.lt.s32.totalorder %s16, 1
        %s146 = scalar_select %p145, %s16, 1
        %s147 = smul.addr %s146, 54
        %s148 = smul.addr %s147, 4
        %s149 = scalar_lea.vmem %s0, %s148
      $region28: #{mfm_conv.1} parent=23 // pred_fallthru
        _
    $region24: #{mfm_conv.1} parent=5 // pred_fallthru
      _
    %p150 = scmp.le.s32.totalorder 1, %s9
    %p151 = scmp.lt.s32.totalorder %s9, 5
    %p152 = pnand %p150, %p151
    %p153 = pneg %p152
    // Predicated region
    $region29: #{mfm_conv.1} parent=5 // pred_check
      _
    $region30: #{mfm_conv.1} parent=5 // pred_check_branch
      %155 = sbr.rel (%p152) target = $region32
    $region31: #{mfm_conv.1} parent=5 // pred_region
      %s156 = ssub.s32 %s9, 1
      %p157 = scmp.lt.s32.totalorder %s18, 1
      %s158 = scalar_select %p157, %s18, 1
      %s159 = smul.addr %s158, 54
      %s160 = smul.addr %s159, 4
      %s161 = scalar_lea.vmem %s0, %s160
      %p162 = pneg %p47
      %p163 = pneg %p44
      %p164 = pneg %p68
      %p165 = pneg %p65
      %p166 = pneg %p89
      %p167 = pneg %p86
      %p168 = pneg %p117
      %p169 = pneg %p114
      %s170 = smul.u32 8, %s19
      %p171 = scmp.lt.s32.totalorder %s18, 1
      %s172 = scalar_select %p171, %s18, 1
      %p173 = scmp.lt.s32.totalorder %s170, 15
      %s174 = scalar_select %p173, %s170, 15
      %s175 = smul.addr %s174, 2
      %s176 = smul.addr %s172, 32
      %s177 = sadd.s32 %s175, %s176
      %s178 = smul.addr %s177, 8
      %s179 = scalar_lea.vmem %s3, %s178
      %p180 = scmp.lt.s32.totalorder %s18, 1
      %s181 = scalar_select %p180, %s18, 1
      %s182 = smul.addr %s181, 54
      %s183 = smul.addr %s182, 4
      %s184 = scalar_lea.vmem %s0, %s183
      %s185 = smul.u32 8, %s19
      %p186 = scmp.lt.s32.totalorder %s18, 1
      %s187 = scalar_select %p186, %s18, 1
      %p188 = scmp.lt.s32.totalorder %s185, 15
      %s189 = scalar_select %p188, %s185, 15
      %s190 = smul.addr %s189, 2
      %s191 = smul.addr %s187, 32
      %s192 = sadd.s32 %s190, %s191
      %s193 = smul.addr %s192, 8
      %s194 = scalar_lea.vmem %s3, %s193
      %s195 = smul.u32 8, %s19
      %s197 = smul.u32 %s19, 8
      %s198 = smul.u32 %s197, 3
      %s199 = smul.addr %s198, 4
      %s200 = scalar_lea.vmem %s184, %s199
      %v201 = vld [vmem:[%s200] sm:$0xf]
      %v202 = vld [vmem:[%s200 + $0x4] sm:$0xf]
      %v203 = vld [vmem:[%s200 + $0xc] sm:$0xf]
      %v204 = vld [vmem:[%s200 + $0x10] sm:$0xf]
      %v205 = vld [vmem:[%s200 + $0x18] sm:$0xf]
      %v206 = vld [vmem:[%s200 + $0x1c] sm:$0xf]
      %v207 = vld [vmem:[%s200 + $0x24] sm:$0xf]
      %v208 = vld [vmem:[%s200 + $0x28] sm:$0xf]
      %v209 = vld [vmem:[%s200 + $0x30] sm:$0xf]
      %v210 = vld [vmem:[%s200 + $0x34] sm:$0xf]
      %v211 = vld [vmem:[%s200 + $0x3c] sm:$0xf]
      %v212 = vld [vmem:[%s200 + $0x40] sm:$0xf]
      %v213 = vld [vmem:[%s200 + $0x48] sm:$0xf]
      %v214 = vld [vmem:[%s200 + $0x4c] sm:$0xf]
      %v215 = vld [vmem:[%s200 + $0x54] sm:$0xf]
      %v216 = vld [vmem:[%s200 + $0x58] sm:$0xf]
      %v217 = vld [vmem:[%s1] sm:$0x3]
      %v218 = vld [vmem:[%s200 + $0x8] sm:$0x1]
      %v219 = vld [vmem:[%s200 + $0x14] sm:$0x1]
      %v220 = vld [vmem:[%s200 + $0x20] sm:$0x1]
      %v221 = vld [vmem:[%s200 + $0x2c] sm:$0x1]
      %v222 = vld [vmem:[%s200 + $0x38] sm:$0x1]
      %v223 = vld [vmem:[%s200 + $0x44] sm:$0x1]
      %v224 = vld [vmem:[%s200 + $0x50] sm:$0x1]
      %v225 = vld [vmem:[%s200 + $0x5c] sm:$0x1]
      %vm226 = vsmask.f32 3328
      %vm227 = vsmask.f32 7440
      %vm228 = vmor %vm226, %vm227
      %v230 = vshrl.u32 %v201, 16
      %v232 = vrot.slane %v230, 4
      %v233 = vshll.u32 %v201, 16
      %v235 = vrot.slane %v233, 5
      %v236 = vor.u32 %v232, %v235
      %v237 = vrot.slane %v236, 4
      %v239 = vshll.u32 %v202, 16
      %v241 = vrot.slane %v239, 5
      %v242 = vsel %vm228, %v237, %v241
      %v243 = vshrl.u32 %v202, 16
      %v245 = vrot.slane %v243, 4
      %v246 = vor.u32 %v245, %v241
      %v247 = vrot.slane %v246, 4
      %v249 = vshll.u32 %v218, 16
      %v251 = vrot.slane %v249, 5
      %v252 = vsel %vm228, %v247, %v251
      %v254 = vshrl.u32 %v203, 16
      %v256 = vrot.slane %v254, 4
      %v257 = vshll.u32 %v203, 16
      %v259 = vrot.slane %v257, 5
      %v260 = vor.u32 %v256, %v259
      %v261 = vrot.slane %v260, 4
      %v263 = vshll.u32 %v204, 16
      %v265 = vrot.slane %v263, 5
      %v266 = vsel %vm228, %v261, %v265
      %v267 = vshrl.u32 %v204, 16
      %v269 = vrot.slane %v267, 4
      %v270 = vor.u32 %v269, %v265
      %v271 = vrot.slane %v270, 4
      %v273 = vshll.u32 %v219, 16
      %v275 = vrot.slane %v273, 5
      %v276 = vsel %vm228, %v271, %v275
      %v278 = vshrl.u32 %v205, 16
      %v280 = vrot.slane %v278, 4
      %v281 = vshll.u32 %v205, 16
      %v283 = vrot.slane %v281, 5
      %v284 = vor.u32 %v280, %v283
      %v285 = vrot.slane %v284, 4
      %v287 = vshll.u32 %v206, 16
      %v289 = vrot.slane %v287, 5
      %v290 = vsel %vm228, %v285, %v289
      %v291 = vshrl.u32 %v206, 16
      %v293 = vrot.slane %v291, 4
      %v294 = vor.u32 %v293, %v289
      %v295 = vrot.slane %v294, 4
      %v297 = vshll.u32 %v220, 16
      %v299 = vrot.slane %v297, 5
      %v300 = vsel %vm228, %v295, %v299
      %v302 = vshrl.u32 %v207, 16
      %v304 = vrot.slane %v302, 4
      %v305 = vshll.u32 %v207, 16
      %v307 = vrot.slane %v305, 5
      %v308 = vor.u32 %v304, %v307
      %v309 = vrot.slane %v308, 4
      %v311 = vshll.u32 %v208, 16
      %v313 = vrot.slane %v311, 5
      %v314 = vsel %vm228, %v309, %v313
      %v315 = vshrl.u32 %v208, 16
      %v317 = vrot.slane %v315, 4
      %v318 = vor.u32 %v317, %v313
      %v319 = vrot.slane %v318, 4
      %v321 = vshll.u32 %v221, 16
      %v323 = vrot.slane %v321, 5
      %v324 = vsel %vm228, %v319, %v323
      %v326 = vshrl.u32 %v209, 16
      %v328 = vrot.slane %v326, 4
      %v329 = vshll.u32 %v209, 16
      %v331 = vrot.slane %v329, 5
      %v332 = vor.u32 %v328, %v331
      %v333 = vrot.slane %v332, 4
      %v335 = vshll.u32 %v210, 16
      %v337 = vrot.slane %v335, 5
      %v338 = vsel %vm228, %v333, %v337
      %v339 = vshrl.u32 %v210, 16
      %v341 = vrot.slane %v339, 4
      %v342 = vor.u32 %v341, %v337
      %v343 = vrot.slane %v342, 4
      %v345 = vshll.u32 %v222, 16
      %v347 = vrot.slane %v345, 5
      %v348 = vsel %vm228, %v343, %v347
      %v350 = vshrl.u32 %v211, 16
      %v352 = vrot.slane %v350, 4
      %v353 = vshll.u32 %v211, 16
      %v355 = vrot.slane %v353, 5
      %v356 = vor.u32 %v352, %v355
      %v357 = vrot.slane %v356, 4
      %v359 = vshll.u32 %v212, 16
      %v361 = vrot.slane %v359, 5
      %v362 = vsel %vm228, %v357, %v361
      %v363 = vshrl.u32 %v212, 16
      %v365 = vrot.slane %v363, 4
      %v366 = vor.u32 %v365, %v361
      %v367 = vrot.slane %v366, 4
      %v369 = vshll.u32 %v223, 16
      %v371 = vrot.slane %v369, 5
      %v372 = vsel %vm228, %v367, %v371
      %v374 = vshrl.u32 %v213, 16
      %v376 = vrot.slane %v374, 4
      %v377 = vshll.u32 %v213, 16
      %v379 = vrot.slane %v377, 5
      %v380 = vor.u32 %v376, %v379
      %v381 = vrot.slane %v380, 4
      %v383 = vshll.u32 %v214, 16
      %v385 = vrot.slane %v383, 5
      %v386 = vsel %vm228, %v381, %v385
      %v387 = vshrl.u32 %v214, 16
      %v389 = vrot.slane %v387, 4
      %v390 = vor.u32 %v389, %v385
      %v391 = vrot.slane %v390, 4
      %v393 = vshll.u32 %v224, 16
      %v395 = vrot.slane %v393, 5
      %v396 = vsel %vm228, %v391, %v395
      %v398 = vshrl.u32 %v215, 16
      %v400 = vrot.slane %v398, 4
      %v401 = vshll.u32 %v215, 16
      %v403 = vrot.slane %v401, 5
      %v404 = vor.u32 %v400, %v403
      %v405 = vrot.slane %v404, 4
      %v407 = vshll.u32 %v216, 16
      %v409 = vrot.slane %v407, 5
      %v410 = vsel %vm228, %v405, %v409
      %v411 = vshrl.u32 %v216, 16
      %v413 = vrot.slane %v411, 4
      %v414 = vor.u32 %v413, %v409
      %v415 = vrot.slane %v414, 4
      %v417 = vshll.u32 %v225, 16
      %v419 = vrot.slane %v417, 5
      %v420 = vsel %vm228, %v415, %v419
      %s421 = scalar_lea.vmem %s1, 2
      %v422 = vld [vmem:[%s421] sm:$0x3]
      %v423 = vunpack.c.l.b16 %v242
      %v424 = vunpack.c.l.b16 %v252
      %v425 = vunpack.c.l.b16 %v266
      %v426 = vunpack.c.l.b16 %v276
      %v427 = vunpack.c.l.b16 %v290
      %v428 = vunpack.c.l.b16 %v300
      %v429 = vunpack.c.l.b16 %v314
      %v430 = vunpack.c.l.b16 %v324
      %v431 = vunpack.c.l.b16 %v338
      %v432 = vunpack.c.l.b16 %v348
      %v433 = vunpack.c.l.b16 %v362
      %v434 = vunpack.c.l.b16 %v372
      %v435 = vunpack.c.l.b16 %v386
      %v436 = vunpack.c.l.b16 %v396
      %v437 = vunpack.c.l.b16 %v410
      %v438 = vunpack.c.l.b16 %v420
      %v439 = vpack.c.b16 %v424, %v423
      %v440 = vpack.c.b16 %v426, %v425
      %v441 = vpack.c.b16 %v428, %v427
      %v442 = vpack.c.b16 %v430, %v429
      %v443 = vpack.c.b16 %v432, %v431
      %v444 = vpack.c.b16 %v434, %v433
      %v445 = vpack.c.b16 %v436, %v435
      %v446 = vpack.c.b16 %v438, %v437
      %vm447 = vcmask 31744
      %v449 = vsel %vm447, %v439, 0
      %v452 = vsel %vm447, %v440, 0
      %v455 = vsel %vm447, %v441, 0
      %v458 = vsel %vm447, %v442, 0
      %v461 = vsel %vm447, %v443, 0
      %v464 = vsel %vm447, %v444, 0
      %v467 = vsel %vm447, %v445, 0
      %v470 = vsel %vm447, %v446, 0
      %vm472 = vcmask 1041408
      %v474 = vsel %vm472, %v422, 0
      %476 = vmatprep.subr.bf16.mxu0 0
      %477 = vmatpush1.bf16.msra.mxu0 0
      %478 = vmatprep.subr.bf16.mxu0 0
      %479 = vmatpush1.bf16.msra.mxu0 0
      %480 = vmatprep.subr.bf16.mxu0 0
      %481 = vmatpush1.bf16.msra.mxu0 0
      %482 = vmatprep.subr.bf16.mxu0 0
      %483 = vmatpush1.bf16.msra.mxu0 0
      %484 = vmatprep.subr.bf16.mxu0 0
      %485 = vmatpush1.bf16.msra.mxu0 0
      %486 = vmatprep.subr.bf16.mxu0 0
      %487 = vmatpush1.bf16.msra.mxu0 0
      %488 = vmatprep.subr.bf16.mxu0 0
      %489 = vmatpush1.bf16.msra.mxu0 0
      %490 = vmatprep.subr.bf16.mxu0 0
      %491 = vmatpush1.bf16.msra.mxu0 %v474
      %492 = vmatprep.subr.bf16.mxu0 0
      %493 = vmatpush2.bf16.msra.mxu0 0
      %494 = vmatprep.subr.bf16.mxu0 0
      %495 = vmatpush2.bf16.msra.mxu0 0
      %496 = vmatprep.subr.bf16.mxu0 0
      %497 = vmatpush2.bf16.msra.mxu0 0
      %498 = vmatprep.subr.bf16.mxu0 0
      %499 = vmatpush2.bf16.msra.mxu0 0
      %500 = vmatprep.subr.bf16.mxu0 0
      %501 = vmatpush2.bf16.msra.mxu0 0
      %502 = vmatprep.subr.bf16.mxu0 0
      %503 = vmatpush2.bf16.msra.mxu0 0
      %504 = vmatprep.subr.bf16.mxu0 0
      %505 = vmatpush2.bf16.msra.mxu0 0
      %506 = vmatprep.subr.bf16.mxu0 0
      %507 = vmatpush2.bf16.msra.mxu0 0
      %508 = vmatprep.mubr.bf16.mxu0 0
      %509 = vmatmul.mubr.bf16.gmra.mxu0 %v449
      %v510 = vpop.f32.mrf.mxu0
      %v511 = vadd.f32 0.0, %v510
      %v512 = vpop.f32.mrf.mxu0
      %v513 = vpop.f32.mrf.mxu0
      %v514 = vadd.f32 0.0, %v513
      %v515 = vpop.f32.mrf.mxu0
      %516 = vmatprep.mubr.bf16.mxu0 0
      %517 = vmatmul.mubr.bf16.gmra.mxu0 %v452
      %v518 = vpop.f32.mrf.mxu0
      %v519 = vadd.f32 0.0, %v518
      %v520 = vpop.f32.mrf.mxu0
      %v521 = vpop.f32.mrf.mxu0
      %v522 = vadd.f32 0.0, %v521
      %v523 = vpop.f32.mrf.mxu0
      %524 = vmatprep.mubr.bf16.mxu0 0
      %525 = vmatmul.mubr.bf16.gmra.mxu0 %v455
      %v526 = vpop.f32.mrf.mxu0
      %v527 = vadd.f32 0.0, %v526
      %v528 = vpop.f32.mrf.mxu0
      %v529 = vpop.f32.mrf.mxu0
      %v530 = vadd.f32 0.0, %v529
      %v531 = vpop.f32.mrf.mxu0
      %532 = vmatprep.mubr.bf16.mxu0 0
      %533 = vmatmul.mubr.bf16.gmra.mxu0 %v458
      %v534 = vpop.f32.mrf.mxu0
      %v535 = vadd.f32 0.0, %v534
      %v536 = vpop.f32.mrf.mxu0
      %v537 = vpop.f32.mrf.mxu0
      %v538 = vadd.f32 0.0, %v537
      %v539 = vpop.f32.mrf.mxu0
      %540 = vmatprep.mubr.bf16.mxu0 0
      %541 = vmatmul.mubr.bf16.gmra.mxu0 %v461
      %v542 = vpop.f32.mrf.mxu0
      %v543 = vadd.f32 0.0, %v542
      %v544 = vpop.f32.mrf.mxu0
      %v545 = vpop.f32.mrf.mxu0
      %v546 = vadd.f32 0.0, %v545
      %v547 = vpop.f32.mrf.mxu0
      %548 = vmatprep.mubr.bf16.mxu0 0
      %549 = vmatmul.mubr.bf16.gmra.mxu0 %v464
      %v550 = vpop.f32.mrf.mxu0
      %v551 = vadd.f32 0.0, %v550
      %v552 = vpop.f32.mrf.mxu0
      %v553 = vpop.f32.mrf.mxu0
      %v554 = vadd.f32 0.0, %v553
      %v555 = vpop.f32.mrf.mxu0
      %556 = vmatprep.mubr.bf16.mxu0 0
      %557 = vmatmul.mubr.bf16.gmra.mxu0 %v467
      %v558 = vpop.f32.mrf.mxu0
      %v559 = vadd.f32 0.0, %v558
      %v560 = vpop.f32.mrf.mxu0
      %v561 = vpop.f32.mrf.mxu0
      %v562 = vadd.f32 0.0, %v561
      %v563 = vpop.f32.mrf.mxu0
      %564 = vmatprep.mubr.bf16.mxu0 0
      %565 = vmatmul.mubr.bf16.gmra.mxu0 %v470
      %v566 = vpop.f32.mrf.mxu0
      %v567 = vadd.f32 0.0, %v566
      %v568 = vpop.f32.mrf.mxu0
      %v569 = vpop.f32.mrf.mxu0
      %v570 = vadd.f32 0.0, %v569
      %v571 = vpop.f32.mrf.mxu0
      %572 = vdwg.mxu0
      %v589 = vunpack.c.l.b16 %v201
      %v590 = vunpack.c.l.b16 %v202
      %v591 = vunpack.c.l.b16 %v203
      %v592 = vunpack.c.l.b16 %v204
      %v593 = vunpack.c.l.b16 %v205
      %v594 = vunpack.c.l.b16 %v206
      %v595 = vunpack.c.l.b16 %v207
      %v596 = vunpack.c.l.b16 %v208
      %v597 = vunpack.c.l.b16 %v209
      %v598 = vunpack.c.l.b16 %v210
      %v599 = vunpack.c.l.b16 %v211
      %v600 = vunpack.c.l.b16 %v212
      %v601 = vunpack.c.l.b16 %v213
      %v602 = vunpack.c.l.b16 %v214
      %v603 = vunpack.c.l.b16 %v215
      %v604 = vunpack.c.l.b16 %v216
      %v605 = vpack.c.b16 %v590, %v589
      %v606 = vpack.c.b16 %v592, %v591
      %v607 = vpack.c.b16 %v594, %v593
      %v608 = vpack.c.b16 %v596, %v595
      %v609 = vpack.c.b16 %v598, %v597
      %v610 = vpack.c.b16 %v600, %v599
      %v611 = vpack.c.b16 %v602, %v601
      %v612 = vpack.c.b16 %v604, %v603
      %v614 = vsel %vm447, %v605, 0
      %v617 = vsel %vm447, %v606, 0
      %v620 = vsel %vm447, %v607, 0
      %v623 = vsel %vm447, %v608, 0
      %v626 = vsel %vm447, %v609, 0
      %v629 = vsel %vm447, %v610, 0
      %v632 = vsel %vm447, %v611, 0
      %v635 = vsel %vm447, %v612, 0
      %v638 = vsel %vm472, %v217, 0
      %640 = vmatprep.subr.bf16.mxu0 0
      %641 = vmatpush1.bf16.msra.mxu0 0
      %642 = vmatprep.subr.bf16.mxu0 0
      %643 = vmatpush1.bf16.msra.mxu0 0
      %644 = vmatprep.subr.bf16.mxu0 0
      %645 = vmatpush1.bf16.msra.mxu0 0
      %646 = vmatprep.subr.bf16.mxu0 0
      %647 = vmatpush1.bf16.msra.mxu0 0
      %648 = vmatprep.subr.bf16.mxu0 0
      %649 = vmatpush1.bf16.msra.mxu0 0
      %650 = vmatprep.subr.bf16.mxu0 0
      %651 = vmatpush1.bf16.msra.mxu0 0
      %652 = vmatprep.subr.bf16.mxu0 0
      %653 = vmatpush1.bf16.msra.mxu0 0
      %654 = vmatprep.subr.bf16.mxu0 0
      %655 = vmatpush1.bf16.msra.mxu0 %v638
      %656 = vmatprep.subr.bf16.mxu0 0
      %657 = vmatpush2.bf16.msra.mxu0 0
      %658 = vmatprep.subr.bf16.mxu0 0
      %659 = vmatpush2.bf16.msra.mxu0 0
      %660 = vmatprep.subr.bf16.mxu0 0
      %661 = vmatpush2.bf16.msra.mxu0 0
      %662 = vmatprep.subr.bf16.mxu0 0
      %663 = vmatpush2.bf16.msra.mxu0 0
      %664 = vmatprep.subr.bf16.mxu0 0
      %665 = vmatpush2.bf16.msra.mxu0 0
      %666 = vmatprep.subr.bf16.mxu0 0
      %667 = vmatpush2.bf16.msra.mxu0 0
      %668 = vmatprep.subr.bf16.mxu0 0
      %669 = vmatpush2.bf16.msra.mxu0 0
      %670 = vmatprep.subr.bf16.mxu0 0
      %671 = vmatpush2.bf16.msra.mxu0 0
      %672 = vmatprep.mubr.bf16.mxu0 0
      %673 = vmatmul.mubr.bf16.gmra.mxu0 %v614
      %v674 = vpop.f32.mrf.mxu0
      %v675 = vadd.f32 %v511, %v674
      %v676 = vpop.f32.mrf.mxu0
      %v677 = vpop.f32.mrf.mxu0
      %v678 = vadd.f32 %v514, %v677
      %v679 = vpop.f32.mrf.mxu0
      %680 = vmatprep.mubr.bf16.mxu0 0
      %681 = vmatmul.mubr.bf16.gmra.mxu0 %v617
      %v682 = vpop.f32.mrf.mxu0
      %v683 = vadd.f32 %v519, %v682
      %v684 = vpop.f32.mrf.mxu0
      %v685 = vpop.f32.mrf.mxu0
      %v686 = vadd.f32 %v522, %v685
      %v687 = vpop.f32.mrf.mxu0
      %688 = vmatprep.mubr.bf16.mxu0 0
      %689 = vmatmul.mubr.bf16.gmra.mxu0 %v620
      %v690 = vpop.f32.mrf.mxu0
      %v691 = vadd.f32 %v527, %v690
      %v692 = vpop.f32.mrf.mxu0
      %v693 = vpop.f32.mrf.mxu0
      %v694 = vadd.f32 %v530, %v693
      %v695 = vpop.f32.mrf.mxu0
      %696 = vmatprep.mubr.bf16.mxu0 0
      %697 = vmatmul.mubr.bf16.gmra.mxu0 %v623
      %v698 = vpop.f32.mrf.mxu0
      %v699 = vadd.f32 %v535, %v698
      %v700 = vpop.f32.mrf.mxu0
      %v701 = vpop.f32.mrf.mxu0
      %v702 = vadd.f32 %v538, %v701
      %v703 = vpop.f32.mrf.mxu0
      %704 = vmatprep.mubr.bf16.mxu0 0
      %705 = vmatmul.mubr.bf16.gmra.mxu0 %v626
      %v706 = vpop.f32.mrf.mxu0
      %v707 = vadd.f32 %v543, %v706
      %v708 = vpop.f32.mrf.mxu0
      %v709 = vpop.f32.mrf.mxu0
      %v710 = vadd.f32 %v546, %v709
      %v711 = vpop.f32.mrf.mxu0
      %712 = vmatprep.mubr.bf16.mxu0 0
      %713 = vmatmul.mubr.bf16.gmra.mxu0 %v629
      %v714 = vpop.f32.mrf.mxu0
      %v715 = vadd.f32 %v551, %v714
      %v716 = vpop.f32.mrf.mxu0
      %v717 = vpop.f32.mrf.mxu0
      %v718 = vadd.f32 %v554, %v717
      %v719 = vpop.f32.mrf.mxu0
      %720 = vmatprep.mubr.bf16.mxu0 0
      %721 = vmatmul.mubr.bf16.gmra.mxu0 %v632
      %v722 = vpop.f32.mrf.mxu0
      %v723 = vadd.f32 %v559, %v722
      %v724 = vpop.f32.mrf.mxu0
      %v725 = vpop.f32.mrf.mxu0
      %v726 = vadd.f32 %v562, %v725
      %v727 = vpop.f32.mrf.mxu0
      %728 = vmatprep.mubr.bf16.mxu0 0
      %729 = vmatmul.mubr.bf16.gmra.mxu0 %v635
      %v730 = vpop.f32.mrf.mxu0
      %v731 = vadd.f32 %v567, %v730
      %v732 = vpop.f32.mrf.mxu0
      %v733 = vpop.f32.mrf.mxu0
      %v734 = vadd.f32 %v570, %v733
      %v735 = vpop.f32.mrf.mxu0
      %736 = vdwg.mxu0
      %v737 = vld [vmem:[%s200] sm:$0xe]
      %v738 = vld [vmem:[%s200 + $0xc] sm:$0xe]
      %v739 = vld [vmem:[%s200 + $0x18] sm:$0xe]
      %v740 = vld [vmem:[%s200 + $0x24] sm:$0xe]
      %v741 = vld [vmem:[%s200 + $0x30] sm:$0xe]
      %v742 = vld [vmem:[%s200 + $0x3c] sm:$0xe]
      %v743 = vld [vmem:[%s200 + $0x48] sm:$0xe]
      %v744 = vld [vmem:[%s200 + $0x54] sm:$0xe]
      %vm761 = vcmask 1042432
      %vm762 = vcmask 1046532
      %vm763 = vmor %vm761, %vm762
      %v764 = vrot.slane %v737, 5
      %v765 = vrot.slane %v764, 4
      %v766 = vrot.slane %v202, 5
      %v767 = vsel %vm763, %v765, %v766
      %v768 = vrot.slane %v766, 4
      %v769 = vrot.slane %v218, 5
      %v770 = vsel %vm763, %v768, %v769
      %v771 = vrot.slane %v738, 5
      %v772 = vrot.slane %v771, 4
      %v773 = vrot.slane %v204, 5
      %v774 = vsel %vm763, %v772, %v773
      %v775 = vrot.slane %v773, 4
      %v776 = vrot.slane %v219, 5
      %v777 = vsel %vm763, %v775, %v776
      %v778 = vrot.slane %v739, 5
      %v779 = vrot.slane %v778, 4
      %v780 = vrot.slane %v206, 5
      %v781 = vsel %vm763, %v779, %v780
      %v782 = vrot.slane %v780, 4
      %v783 = vrot.slane %v220, 5
      %v784 = vsel %vm763, %v782, %v783
      %v785 = vrot.slane %v740, 5
      %v786 = vrot.slane %v785, 4
      %v787 = vrot.slane %v208, 5
      %v788 = vsel %vm763, %v786, %v787
      %v789 = vrot.slane %v787, 4
      %v790 = vrot.slane %v221, 5
      %v791 = vsel %vm763, %v789, %v790
      %v792 = vrot.slane %v741, 5
      %v793 = vrot.slane %v792, 4
      %v794 = vrot.slane %v210, 5
      %v795 = vsel %vm763, %v793, %v794
      %v796 = vrot.slane %v794, 4
      %v797 = vrot.slane %v222, 5
      %v798 = vsel %vm763, %v796, %v797
      %v799 = vrot.slane %v742, 5
      %v800 = vrot.slane %v799, 4
      %v801 = vrot.slane %v212, 5
      %v802 = vsel %vm763, %v800, %v801
      %v803 = vrot.slane %v801, 4
      %v804 = vrot.slane %v223, 5
      %v805 = vsel %vm763, %v803, %v804
      %v806 = vrot.slane %v743, 5
      %v807 = vrot.slane %v806, 4
      %v808 = vrot.slane %v214, 5
      %v809 = vsel %vm763, %v807, %v808
      %v810 = vrot.slane %v808, 4
      %v811 = vrot.slane %v224, 5
      %v812 = vsel %vm763, %v810, %v811
      %v813 = vrot.slane %v744, 5
      %v814 = vrot.slane %v813, 4
      %v815 = vrot.slane %v216, 5
      %v816 = vsel %vm763, %v814, %v815
      %v817 = vrot.slane %v815, 4
      %v818 = vrot.slane %v225, 5
      %v819 = vsel %vm763, %v817, %v818
      %s820 = scalar_lea.vmem %s1, 4
      %v821 = vld [vmem:[%s820] sm:$0x3]
      %v822 = vunpack.c.l.b16 %v767
      %v823 = vunpack.c.l.b16 %v770
      %v824 = vunpack.c.l.b16 %v774
      %v825 = vunpack.c.l.b16 %v777
      %v826 = vunpack.c.l.b16 %v781
      %v827 = vunpack.c.l.b16 %v784
      %v828 = vunpack.c.l.b16 %v788
      %v829 = vunpack.c.l.b16 %v791
      %v830 = vunpack.c.l.b16 %v795
      %v831 = vunpack.c.l.b16 %v798
      %v832 = vunpack.c.l.b16 %v802
      %v833 = vunpack.c.l.b16 %v805
      %v834 = vunpack.c.l.b16 %v809
      %v835 = vunpack.c.l.b16 %v812
      %v836 = vunpack.c.l.b16 %v816
      %v837 = vunpack.c.l.b16 %v819
      %v838 = vpack.c.b16 %v823, %v822
      %v839 = vpack.c.b16 %v825, %v824
      %v840 = vpack.c.b16 %v827, %v826
      %v841 = vpack.c.b16 %v829, %v828
      %v842 = vpack.c.b16 %v831, %v830
      %v843 = vpack.c.b16 %v833, %v832
      %v844 = vpack.c.b16 %v835, %v834
      %v845 = vpack.c.b16 %v837, %v836
      %v847 = vsel %vm447, %v838, 0
      %v850 = vsel %vm447, %v839, 0
      %v853 = vsel %vm447, %v840, 0
      %v856 = vsel %vm447, %v841, 0
      %v859 = vsel %vm447, %v842, 0
      %v862 = vsel %vm447, %v843, 0
      %v865 = vsel %vm447, %v844, 0
      %v868 = vsel %vm447, %v845, 0
      %v871 = vsel %vm472, %v821, 0
      %873 = vmatprep.subr.bf16.mxu0 0
      %874 = vmatpush1.bf16.msra.mxu0 0
      %875 = vmatprep.subr.bf16.mxu0 0
      %876 = vmatpush1.bf16.msra.mxu0 0
      %877 = vmatprep.subr.bf16.mxu0 0
      %878 = vmatpush1.bf16.msra.mxu0 0
      %879 = vmatprep.subr.bf16.mxu0 0
      %880 = vmatpush1.bf16.msra.mxu0 0
      %881 = vmatprep.subr.bf16.mxu0 0
      %882 = vmatpush1.bf16.msra.mxu0 0
      %883 = vmatprep.subr.bf16.mxu0 0
      %884 = vmatpush1.bf16.msra.mxu0 0
      %885 = vmatprep.subr.bf16.mxu0 0
      %886 = vmatpush1.bf16.msra.mxu0 0
      %887 = vmatprep.subr.bf16.mxu0 0
      %888 = vmatpush1.bf16.msra.mxu0 %v871
      %889 = vmatprep.subr.bf16.mxu0 0
      %890 = vmatpush2.bf16.msra.mxu0 0
      %891 = vmatprep.subr.bf16.mxu0 0
      %892 = vmatpush2.bf16.msra.mxu0 0
      %893 = vmatprep.subr.bf16.mxu0 0
      %894 = vmatpush2.bf16.msra.mxu0 0
      %895 = vmatprep.subr.bf16.mxu0 0
      %896 = vmatpush2.bf16.msra.mxu0 0
      %897 = vmatprep.subr.bf16.mxu0 0
      %898 = vmatpush2.bf16.msra.mxu0 0
      %899 = vmatprep.subr.bf16.mxu0 0
      %900 = vmatpush2.bf16.msra.mxu0 0
      %901 = vmatprep.subr.bf16.mxu0 0
      %902 = vmatpush2.bf16.msra.mxu0 0
      %903 = vmatprep.subr.bf16.mxu0 0
      %904 = vmatpush2.bf16.msra.mxu0 0
      %905 = vmatprep.mubr.bf16.mxu0 0
      %906 = vmatmul.mubr.bf16.gmra.mxu0 %v847
      %v907 = vpop.f32.mrf.mxu0
      %v908 = vadd.f32 0.0, %v907
      %v909 = vpop.f32.mrf.mxu0
      %v910 = vpop.f32.mrf.mxu0
      %v911 = vadd.f32 0.0, %v910
      %v912 = vpop.f32.mrf.mxu0
      %913 = vmatprep.mubr.bf16.mxu0 0
      %914 = vmatmul.mubr.bf16.gmra.mxu0 %v850
      %v915 = vpop.f32.mrf.mxu0
      %v916 = vadd.f32 0.0, %v915
      %v917 = vpop.f32.mrf.mxu0
      %v918 = vpop.f32.mrf.mxu0
      %v919 = vadd.f32 0.0, %v918
      %v920 = vpop.f32.mrf.mxu0
      %921 = vmatprep.mubr.bf16.mxu0 0
      %922 = vmatmul.mubr.bf16.gmra.mxu0 %v853
      %v923 = vpop.f32.mrf.mxu0
      %v924 = vadd.f32 0.0, %v923
      %v925 = vpop.f32.mrf.mxu0
      %v926 = vpop.f32.mrf.mxu0
      %v927 = vadd.f32 0.0, %v926
      %v928 = vpop.f32.mrf.mxu0
      %929 = vmatprep.mubr.bf16.mxu0 0
      %930 = vmatmul.mubr.bf16.gmra.mxu0 %v856
      %v931 = vpop.f32.mrf.mxu0
      %v932 = vadd.f32 0.0, %v931
      %v933 = vpop.f32.mrf.mxu0
      %v934 = vpop.f32.mrf.mxu0
      %v935 = vadd.f32 0.0, %v934
      %v936 = vpop.f32.mrf.mxu0
      %937 = vmatprep.mubr.bf16.mxu0 0
      %938 = vmatmul.mubr.bf16.gmra.mxu0 %v859
      %v939 = vpop.f32.mrf.mxu0
      %v940 = vadd.f32 0.0, %v939
      %v941 = vpop.f32.mrf.mxu0
      %v942 = vpop.f32.mrf.mxu0
      %v943 = vadd.f32 0.0, %v942
      %v944 = vpop.f32.mrf.mxu0
      %945 = vmatprep.mubr.bf16.mxu0 0
      %946 = vmatmul.mubr.bf16.gmra.mxu0 %v862
      %v947 = vpop.f32.mrf.mxu0
      %v948 = vadd.f32 0.0, %v947
      %v949 = vpop.f32.mrf.mxu0
      %v950 = vpop.f32.mrf.mxu0
      %v951 = vadd.f32 0.0, %v950
      %v952 = vpop.f32.mrf.mxu0
      %953 = vmatprep.mubr.bf16.mxu0 0
      %954 = vmatmul.mubr.bf16.gmra.mxu0 %v865
      %v955 = vpop.f32.mrf.mxu0
      %v956 = vadd.f32 0.0, %v955
      %v957 = vpop.f32.mrf.mxu0
      %v958 = vpop.f32.mrf.mxu0
      %v959 = vadd.f32 0.0, %v958
      %v960 = vpop.f32.mrf.mxu0
      %961 = vmatprep.mubr.bf16.mxu0 0
      %962 = vmatmul.mubr.bf16.gmra.mxu0 %v868
      %v963 = vpop.f32.mrf.mxu0
      %v964 = vadd.f32 0.0, %v963
      %v965 = vpop.f32.mrf.mxu0
      %v966 = vpop.f32.mrf.mxu0
      %v967 = vadd.f32 0.0, %v966
      %v968 = vpop.f32.mrf.mxu0
      %969 = vdwg.mxu0
      %v970 = vadd.f32 %v675, %v908
      %v971 = vadd.f32 %v678, %v911
      %v972 = vadd.f32 %v683, %v916
      %v973 = vadd.f32 %v686, %v919
      %v974 = vadd.f32 %v691, %v924
      %v975 = vadd.f32 %v694, %v927
      %v976 = vadd.f32 %v699, %v932
      %v977 = vadd.f32 %v702, %v935
      %v978 = vadd.f32 %v707, %v940
      %v979 = vadd.f32 %v710, %v943
      %v980 = vadd.f32 %v715, %v948
      %v981 = vadd.f32 %v718, %v951
      %v982 = vadd.f32 %v723, %v956
      %v983 = vadd.f32 %v726, %v959
      %v984 = vadd.f32 %v731, %v964
      %v985 = vadd.f32 %v734, %v967
      %s986 = sadd.s32 %s197, 1
      %s987 = smul.u32 %s986, 3
      %s988 = smul.addr %s987, 4
      %s989 = scalar_lea.vmem %s184, %s988
      %v990 = vld [vmem:[%s989] sm:$0xf]
      %v991 = vld [vmem:[%s989 + $0x4] sm:$0xf]
      %v992 = vld [vmem:[%s989 + $0xc] sm:$0xf]
      %v993 = vld [vmem:[%s989 + $0x10] sm:$0xf]
      %v994 = vld [vmem:[%s989 + $0x18] sm:$0xf]
      %v995 = vld [vmem:[%s989 + $0x1c] sm:$0xf]
      %v996 = vld [vmem:[%s989 + $0x24] sm:$0xf]
      %v997 = vld [vmem:[%s989 + $0x28] sm:$0xf]
      %v998 = vld [vmem:[%s989 + $0x30] sm:$0xf]
      %v999 = vld [vmem:[%s989 + $0x34] sm:$0xf]
      %v1000 = vld [vmem:[%s989 + $0x3c] sm:$0xf]
      %v1001 = vld [vmem:[%s989 + $0x40] sm:$0xf]
      %v1002 = vld [vmem:[%s989 + $0x48] sm:$0xf]
      %v1003 = vld [vmem:[%s989 + $0x4c] sm:$0xf]
      %v1004 = vld [vmem:[%s989 + $0x54] sm:$0xf]
      %v1005 = vld [vmem:[%s989 + $0x58] sm:$0xf]
      %s1006 = scalar_lea.vmem %s1, 6
      %v1007 = vld [vmem:[%s1006] sm:$0x3]
      %v1024 = vunpack.c.l.b16 %v990
      %v1025 = vunpack.c.l.b16 %v991
      %v1026 = vunpack.c.l.b16 %v992
      %v1027 = vunpack.c.l.b16 %v993
      %v1028 = vunpack.c.l.b16 %v994
      %v1029 = vunpack.c.l.b16 %v995
      %v1030 = vunpack.c.l.b16 %v996
      %v1031 = vunpack.c.l.b16 %v997
      %v1032 = vunpack.c.l.b16 %v998
      %v1033 = vunpack.c.l.b16 %v999
      %v1034 = vunpack.c.l.b16 %v1000
      %v1035 = vunpack.c.l.b16 %v1001
      %v1036 = vunpack.c.l.b16 %v1002
      %v1037 = vunpack.c.l.b16 %v1003
      %v1038 = vunpack.c.l.b16 %v1004
      %v1039 = vunpack.c.l.b16 %v1005
      %v1040 = vpack.c.b16 %v1025, %v1024
      %v1041 = vpack.c.b16 %v1027, %v1026
      %v1042 = vpack.c.b16 %v1029, %v1028
      %v1043 = vpack.c.b16 %v1031, %v1030
      %v1044 = vpack.c.b16 %v1033, %v1032
      %v1045 = vpack.c.b16 %v1035, %v1034
      %v1046 = vpack.c.b16 %v1037, %v1036
      %v1047 = vpack.c.b16 %v1039, %v1038
      %v1049 = vsel %vm447, %v1040, 0
      %v1052 = vsel %vm447, %v1041, 0
      %v1055 = vsel %vm447, %v1042, 0
      %v1058 = vsel %vm447, %v1043, 0
      %v1061 = vsel %vm447, %v1044, 0
      %v1064 = vsel %vm447, %v1045, 0
      %v1067 = vsel %vm447, %v1046, 0
      %v1070 = vsel %vm447, %v1047, 0
      %v1073 = vsel %vm472, %v1007, 0
      %1075 = vmatprep.subr.bf16.mxu0 0
      %1076 = vmatpush1.bf16.msra.mxu0 0
      %1077 = vmatprep.subr.bf16.mxu0 0
      %1078 = vmatpush1.bf16.msra.mxu0 0
      %1079 = vmatprep.subr.bf16.mxu0 0
      %1080 = vmatpush1.bf16.msra.mxu0 0
      %1081 = vmatprep.subr.bf16.mxu0 0
      %1082 = vmatpush1.bf16.msra.mxu0 0
      %1083 = vmatprep.subr.bf16.mxu0 0
      %1084 = vmatpush1.bf16.msra.mxu0 0
      %1085 = vmatprep.subr.bf16.mxu0 0
      %1086 = vmatpush1.bf16.msra.mxu0 0
      %1087 = vmatprep.subr.bf16.mxu0 0
      %1088 = vmatpush1.bf16.msra.mxu0 0
      %1089 = vmatprep.subr.bf16.mxu0 0
      %1090 = vmatpush1.bf16.msra.mxu0 %v1073
      %1091 = vmatprep.subr.bf16.mxu0 0
      %1092 = vmatpush2.bf16.msra.mxu0 0
      %1093 = vmatprep.subr.bf16.mxu0 0
      %1094 = vmatpush2.bf16.msra.mxu0 0
      %1095 = vmatprep.subr.bf16.mxu0 0
      %1096 = vmatpush2.bf16.msra.mxu0 0
      %1097 = vmatprep.subr.bf16.mxu0 0
      %1098 = vmatpush2.bf16.msra.mxu0 0
      %1099 = vmatprep.subr.bf16.mxu0 0
      %1100 = vmatpush2.bf16.msra.mxu0 0
      %1101 = vmatprep.subr.bf16.mxu0 0
      %1102 = vmatpush2.bf16.msra.mxu0 0
      %1103 = vmatprep.subr.bf16.mxu0 0
      %1104 = vmatpush2.bf16.msra.mxu0 0
      %1105 = vmatprep.subr.bf16.mxu0 0
      %1106 = vmatpush2.bf16.msra.mxu0 0
      %1107 = vmatprep.mubr.bf16.mxu0 0
      %1108 = vmatmul.mubr.bf16.gmra.mxu0 %v1049
      %v1109 = vpop.f32.mrf.mxu0
      %v1110 = vadd.f32 0.0, %v1109
      %v1111 = vpop.f32.mrf.mxu0
      %v1112 = vpop.f32.mrf.mxu0
      %v1113 = vadd.f32 0.0, %v1112
      %v1114 = vpop.f32.mrf.mxu0
      %1115 = vmatprep.mubr.bf16.mxu0 0
      %1116 = vmatmul.mubr.bf16.gmra.mxu0 %v1052
      %v1117 = vpop.f32.mrf.mxu0
      %v1118 = vadd.f32 0.0, %v1117
      %v1119 = vpop.f32.mrf.mxu0
      %v1120 = vpop.f32.mrf.mxu0
      %v1121 = vadd.f32 0.0, %v1120
      %v1122 = vpop.f32.mrf.mxu0
      %1123 = vmatprep.mubr.bf16.mxu0 0
      %1124 = vmatmul.mubr.bf16.gmra.mxu0 %v1055
      %v1125 = vpop.f32.mrf.mxu0
      %v1126 = vadd.f32 0.0, %v1125
      %v1127 = vpop.f32.mrf.mxu0
      %v1128 = vpop.f32.mrf.mxu0
      %v1129 = vadd.f32 0.0, %v1128
      %v1130 = vpop.f32.mrf.mxu0
      %1131 = vmatprep.mubr.bf16.mxu0 0
      %1132 = vmatmul.mubr.bf16.gmra.mxu0 %v1058
      %v1133 = vpop.f32.mrf.mxu0
      %v1134 = vadd.f32 0.0, %v1133
      %v1135 = vpop.f32.mrf.mxu0
      %v1136 = vpop.f32.mrf.mxu0
      %v1137 = vadd.f32 0.0, %v1136
      %v1138 = vpop.f32.mrf.mxu0
      %1139 = vmatprep.mubr.bf16.mxu0 0
      %1140 = vmatmul.mubr.bf16.gmra.mxu0 %v1061
      %v1141 = vpop.f32.mrf.mxu0
      %v1142 = vadd.f32 0.0, %v1141
      %v1143 = vpop.f32.mrf.mxu0
      %v1144 = vpop.f32.mrf.mxu0
      %v1145 = vadd.f32 0.0, %v1144
      %v1146 = vpop.f32.mrf.mxu0
      %1147 = vmatprep.mubr.bf16.mxu0 0
      %1148 = vmatmul.mubr.bf16.gmra.mxu0 %v1064
      %v1149 = vpop.f32.mrf.mxu0
      %v1150 = vadd.f32 0.0, %v1149
      %v1151 = vpop.f32.mrf.mxu0
      %v1152 = vpop.f32.mrf.mxu0
      %v1153 = vadd.f32 0.0, %v1152
      %v1154 = vpop.f32.mrf.mxu0
      %1155 = vmatprep.mubr.bf16.mxu0 0
      %1156 = vmatmul.mubr.bf16.gmra.mxu0 %v1067
      %v1157 = vpop.f32.mrf.mxu0
      %v1158 = vadd.f32 0.0, %v1157
      %v1159 = vpop.f32.mrf.mxu0
      %v1160 = vpop.f32.mrf.mxu0
      %v1161 = vadd.f32 0.0, %v1160
      %v1162 = vpop.f32.mrf.mxu0
      %1163 = vmatprep.mubr.bf16.mxu0 0
      %1164 = vmatmul.mubr.bf16.gmra.mxu0 %v1070
      %v1165 = vpop.f32.mrf.mxu0
      %v1166 = vadd.f32 0.0, %v1165
      %v1167 = vpop.f32.mrf.mxu0
      %v1168 = vpop.f32.mrf.mxu0
      %v1169 = vadd.f32 0.0, %v1168
      %v1170 = vpop.f32.mrf.mxu0
      %1171 = vdwg.mxu0
      %v1172 = vadd.f32 %v970, %v1110
      %v1173 = vadd.f32 %v971, %v1113
      %v1174 = vadd.f32 %v972, %v1118
      %v1175 = vadd.f32 %v973, %v1121
      %v1176 = vadd.f32 %v974, %v1126
      %v1177 = vadd.f32 %v975, %v1129
      %v1178 = vadd.f32 %v976, %v1134
      %v1179 = vadd.f32 %v977, %v1137
      %v1180 = vadd.f32 %v978, %v1142
      %v1181 = vadd.f32 %v979, %v1145
      %v1182 = vadd.f32 %v980, %v1150
      %v1183 = vadd.f32 %v981, %v1153
      %v1184 = vadd.f32 %v982, %v1158
      %v1185 = vadd.f32 %v983, %v1161
      %v1186 = vadd.f32 %v984, %v1166
      %v1187 = vadd.f32 %v985, %v1169
      %v1188 = vld [vmem:[%s989] sm:$0xf]
      %v1189 = vld [vmem:[%s989 + $0x4] sm:$0xf]
      %v1190 = vld [vmem:[%s989 + $0x8] sm:$0x1]
      %v1191 = vld [vmem:[%s989 + $0xc] sm:$0xf]
      %v1192 = vld [vmem:[%s989 + $0x10] sm:$0xf]
      %v1193 = vld [vmem:[%s989 + $0x14] sm:$0x1]
      %v1194 = vld [vmem:[%s989 + $0x18] sm:$0xf]
      %v1195 = vld [vmem:[%s989 + $0x1c] sm:$0xf]
      %v1196 = vld [vmem:[%s989 + $0x20] sm:$0x1]
      %v1197 = vld [vmem:[%s989 + $0x24] sm:$0xf]
      %v1198 = vld [vmem:[%s989 + $0x28] sm:$0xf]
      %v1199 = vld [vmem:[%s989 + $0x2c] sm:$0x1]
      %v1200 = vld [vmem:[%s989 + $0x30] sm:$0xf]
      %v1201 = vld [vmem:[%s989 + $0x34] sm:$0xf]
      %v1202 = vld [vmem:[%s989 + $0x38] sm:$0x1]
      %v1203 = vld [vmem:[%s989 + $0x3c] sm:$0xf]
      %v1204 = vld [vmem:[%s989 + $0x40] sm:$0xf]
      %v1205 = vld [vmem:[%s989 + $0x44] sm:$0x1]
      %v1206 = vld [vmem:[%s989 + $0x48] sm:$0xf]
      %v1207 = vld [vmem:[%s989 + $0x4c] sm:$0xf]
      %v1208 = vld [vmem:[%s989 + $0x50] sm:$0x1]
      %v1209 = vld [vmem:[%s989 + $0x54] sm:$0xf]
      %v1210 = vld [vmem:[%s989 + $0x58] sm:$0xf]
      %v1211 = vld [vmem:[%s989 + $0x5c] sm:$0x1]
      %v1213 = vshrl.u32 %v1188, 16
      %v1215 = vrot.slane %v1213, 4
      %v1216 = vshll.u32 %v1188, 16
      %v1218 = vrot.slane %v1216, 5
      %v1219 = vor.u32 %v1215, %v1218
      %v1220 = vrot.slane %v1219, 4
      %v1222 = vshll.u32 %v1189, 16
      %v1224 = vrot.slane %v1222, 5
      %v1225 = vsel %vm228, %v1220, %v1224
      %v1226 = vshrl.u32 %v1189, 16
      %v1228 = vrot.slane %v1226, 4
      %v1229 = vor.u32 %v1228, %v1224
      %v1230 = vrot.slane %v1229, 4
      %v1232 = vshll.u32 %v1190, 16
      %v1234 = vrot.slane %v1232, 5
      %v1235 = vsel %vm228, %v1230, %v1234
      %v1237 = vshrl.u32 %v1191, 16
      %v1239 = vrot.slane %v1237, 4
      %v1240 = vshll.u32 %v1191, 16
      %v1242 = vrot.slane %v1240, 5
      %v1243 = vor.u32 %v1239, %v1242
      %v1244 = vrot.slane %v1243, 4
      %v1246 = vshll.u32 %v1192, 16
      %v1248 = vrot.slane %v1246, 5
      %v1249 = vsel %vm228, %v1244, %v1248
      %v1250 = vshrl.u32 %v1192, 16
      %v1252 = vrot.slane %v1250, 4
      %v1253 = vor.u32 %v1252, %v1248
      %v1254 = vrot.slane %v1253, 4
      %v1256 = vshll.u32 %v1193, 16
      %v1258 = vrot.slane %v1256, 5
      %v1259 = vsel %vm228, %v1254, %v1258
      %v1261 = vshrl.u32 %v1194, 16
      %v1263 = vrot.slane %v1261, 4
      %v1264 = vshll.u32 %v1194, 16
      %v1266 = vrot.slane %v1264, 5
      %v1267 = vor.u32 %v1263, %v1266
      %v1268 = vrot.slane %v1267, 4
      %v1270 = vshll.u32 %v1195, 16
      %v1272 = vrot.slane %v1270, 5
      %v1273 = vsel %vm228, %v1268, %v1272
      %v1274 = vshrl.u32 %v1195, 16
      %v1276 = vrot.slane %v1274, 4
      %v1277 = vor.u32 %v1276, %v1272
      %v1278 = vrot.slane %v1277, 4
      %v1280 = vshll.u32 %v1196, 16
      %v1282 = vrot.slane %v1280, 5
      %v1283 = vsel %vm228, %v1278, %v1282
      %v1285 = vshrl.u32 %v1197, 16
      %v1287 = vrot.slane %v1285, 4
      %v1288 = vshll.u32 %v1197, 16
      %v1290 = vrot.slane %v1288, 5
      %v1291 = vor.u32 %v1287, %v1290
      %v1292 = vrot.slane %v1291, 4
      %v1294 = vshll.u32 %v1198, 16
      %v1296 = vrot.slane %v1294, 5
      %v1297 = vsel %vm228, %v1292, %v1296
      %v1298 = vshrl.u32 %v1198, 16
      %v1300 = vrot.slane %v1298, 4
      %v1301 = vor.u32 %v1300, %v1296
      %v1302 = vrot.slane %v1301, 4
      %v1304 = vshll.u32 %v1199, 16
      %v1306 = vrot.slane %v1304, 5
      %v1307 = vsel %vm228, %v1302, %v1306
      %v1309 = vshrl.u32 %v1200, 16
      %v1311 = vrot.slane %v1309, 4
      %v1312 = vshll.u32 %v1200, 16
      %v1314 = vrot.slane %v1312, 5
      %v1315 = vor.u32 %v1311, %v1314
      %v1316 = vrot.slane %v1315, 4
      %v1318 = vshll.u32 %v1201, 16
      %v1320 = vrot.slane %v1318, 5
      %v1321 = vsel %vm228, %v1316, %v1320
      %v1322 = vshrl.u32 %v1201, 16
      %v1324 = vrot.slane %v1322, 4
      %v1325 = vor.u32 %v1324, %v1320
      %v1326 = vrot.slane %v1325, 4
      %v1328 = vshll.u32 %v1202, 16
      %v1330 = vrot.slane %v1328, 5
      %v1331 = vsel %vm228, %v1326, %v1330
      %v1333 = vshrl.u32 %v1203, 16
      %v1335 = vrot.slane %v1333, 4
      %v1336 = vshll.u32 %v1203, 16
      %v1338 = vrot.slane %v1336, 5
      %v1339 = vor.u32 %v1335, %v1338
      %v1340 = vrot.slane %v1339, 4
      %v1342 = vshll.u32 %v1204, 16
      %v1344 = vrot.slane %v1342, 5
      %v1345 = vsel %vm228, %v1340, %v1344
      %v1346 = vshrl.u32 %v1204, 16
      %v1348 = vrot.slane %v1346, 4
      %v1349 = vor.u32 %v1348, %v1344
      %v1350 = vrot.slane %v1349, 4
      %v1352 = vshll.u32 %v1205, 16
      %v1354 = vrot.slane %v1352, 5
      %v1355 = vsel %vm228, %v1350, %v1354
      %v1357 = vshrl.u32 %v1206, 16
      %v1359 = vrot.slane %v1357, 4
      %v1360 = vshll.u32 %v1206, 16
      %v1362 = vrot.slane %v1360, 5
      %v1363 = vor.u32 %v1359, %v1362
      %v1364 = vrot.slane %v1363, 4
      %v1366 = vshll.u32 %v1207, 16
      %v1368 = vrot.slane %v1366, 5
      %v1369 = vsel %vm228, %v1364, %v1368
      %v1370 = vshrl.u32 %v1207, 16
      %v1372 = vrot.slane %v1370, 4
      %v1373 = vor.u32 %v1372, %v1368
      %v1374 = vrot.slane %v1373, 4
      %v1376 = vshll.u32 %v1208, 16
      %v1378 = vrot.slane %v1376, 5
      %v1379 = vsel %vm228, %v1374, %v1378
      %v1381 = vshrl.u32 %v1209, 16
      %v1383 = vrot.slane %v1381, 4
      %v1384 = vshll.u32 %v1209, 16
      %v1386 = vrot.slane %v1384, 5
      %v1387 = vor.u32 %v1383, %v1386
      %v1388 = vrot.slane %v1387, 4
      %v1390 = vshll.u32 %v1210, 16
      %v1392 = vrot.slane %v1390, 5
      %v1393 = vsel %vm228, %v1388, %v1392
      %v1394 = vshrl.u32 %v1210, 16
      %v1396 = vrot.slane %v1394, 4
      %v1397 = vor.u32 %v1396, %v1392
      %v1398 = vrot.slane %v1397, 4
      %v1400 = vshll.u32 %v1211, 16
      %v1402 = vrot.slane %v1400, 5
      %v1403 = vsel %vm228, %v1398, %v1402
      %s1404 = scalar_lea.vmem %s1, 8
      %v1405 = vld [vmem:[%s1404] sm:$0x3]
      %v1406 = vunpack.c.l.b16 %v1225
      %v1407 = vunpack.c.l.b16 %v1235
      %v1408 = vunpack.c.l.b16 %v1249
      %v1409 = vunpack.c.l.b16 %v1259
      %v1410 = vunpack.c.l.b16 %v1273
      %v1411 = vunpack.c.l.b16 %v1283
      %v1412 = vunpack.c.l.b16 %v1297
      %v1413 = vunpack.c.l.b16 %v1307
      %v1414 = vunpack.c.l.b16 %v1321
      %v1415 = vunpack.c.l.b16 %v1331
      %v1416 = vunpack.c.l.b16 %v1345
      %v1417 = vunpack.c.l.b16 %v1355
      %v1418 = vunpack.c.l.b16 %v1369
      %v1419 = vunpack.c.l.b16 %v1379
      %v1420 = vunpack.c.l.b16 %v1393
      %v1421 = vunpack.c.l.b16 %v1403
      %v1422 = vpack.c.b16 %v1407, %v1406
      %v1423 = vpack.c.b16 %v1409, %v1408
      %v1424 = vpack.c.b16 %v1411, %v1410
      %v1425 = vpack.c.b16 %v1413, %v1412
      %v1426 = vpack.c.b16 %v1415, %v1414
      %v1427 = vpack.c.b16 %v1417, %v1416
      %v1428 = vpack.c.b16 %v1419, %v1418
      %v1429 = vpack.c.b16 %v1421, %v1420
      %v1431 = vsel %vm447, %v1422, 0
      %v1434 = vsel %vm447, %v1423, 0
      %v1437 = vsel %vm447, %v1424, 0
      %v1440 = vsel %vm447, %v1425, 0
      %v1443 = vsel %vm447, %v1426, 0
      %v1446 = vsel %vm447, %v1427, 0
      %v1449 = vsel %vm447, %v1428, 0
      %v1452 = vsel %vm447, %v1429, 0
      %v1455 = vsel %vm472, %v1405, 0
      %1457 = vmatprep.subr.bf16.mxu0 0
      %1458 = vmatpush1.bf16.msra.mxu0 0
      %1459 = vmatprep.subr.bf16.mxu0 0
      %1460 = vmatpush1.bf16.msra.mxu0 0
      %1461 = vmatprep.subr.bf16.mxu0 0
      %1462 = vmatpush1.bf16.msra.mxu0 0
      %1463 = vmatprep.subr.bf16.mxu0 0
      %1464 = vmatpush1.bf16.msra.mxu0 0
      %1465 = vmatprep.subr.bf16.mxu0 0
      %1466 = vmatpush1.bf16.msra.mxu0 0
      %1467 = vmatprep.subr.bf16.mxu0 0
      %1468 = vmatpush1.bf16.msra.mxu0 0
      %1469 = vmatprep.subr.bf16.mxu0 0
      %1470 = vmatpush1.bf16.msra.mxu0 0
      %1471 = vmatprep.subr.bf16.mxu0 0
      %1472 = vmatpush1.bf16.msra.mxu0 %v1455
      %1473 = vmatprep.subr.bf16.mxu0 0
      %1474 = vmatpush2.bf16.msra.mxu0 0
      %1475 = vmatprep.subr.bf16.mxu0 0
      %1476 = vmatpush2.bf16.msra.mxu0 0
      %1477 = vmatprep.subr.bf16.mxu0 0
      %1478 = vmatpush2.bf16.msra.mxu0 0
      %1479 = vmatprep.subr.bf16.mxu0 0
      %1480 = vmatpush2.bf16.msra.mxu0 0
      %1481 = vmatprep.subr.bf16.mxu0 0
      %1482 = vmatpush2.bf16.msra.mxu0 0
      %1483 = vmatprep.subr.bf16.mxu0 0
      %1484 = vmatpush2.bf16.msra.mxu0 0
      %1485 = vmatprep.subr.bf16.mxu0 0
      %1486 = vmatpush2.bf16.msra.mxu0 0
      %1487 = vmatprep.subr.bf16.mxu0 0
      %1488 = vmatpush2.bf16.msra.mxu0 0
      %1489 = vmatprep.mubr.bf16.mxu0 0
      %1490 = vmatmul.mubr.bf16.gmra.mxu0 %v1431
      %v1491 = vpop.f32.mrf.mxu0
      %v1492 = vadd.f32 0.0, %v1491
      %v1493 = vpop.f32.mrf.mxu0
      %v1494 = vpop.f32.mrf.mxu0
      %v1495 = vadd.f32 0.0, %v1494
      %v1496 = vpop.f32.mrf.mxu0
      %1497 = vmatprep.mubr.bf16.mxu0 0
      %1498 = vmatmul.mubr.bf16.gmra.mxu0 %v1434
      %v1499 = vpop.f32.mrf.mxu0
      %v1500 = vadd.f32 0.0, %v1499
      %v1501 = vpop.f32.mrf.mxu0
      %v1502 = vpop.f32.mrf.mxu0
      %v1503 = vadd.f32 0.0, %v1502
      %v1504 = vpop.f32.mrf.mxu0
      %1505 = vmatprep.mubr.bf16.mxu0 0
      %1506 = vmatmul.mubr.bf16.gmra.mxu0 %v1437
      %v1507 = vpop.f32.mrf.mxu0
      %v1508 = vadd.f32 0.0, %v1507
      %v1509 = vpop.f32.mrf.mxu0
      %v1510 = vpop.f32.mrf.mxu0
      %v1511 = vadd.f32 0.0, %v1510
      %v1512 = vpop.f32.mrf.mxu0
      %1513 = vmatprep.mubr.bf16.mxu0 0
      %1514 = vmatmul.mubr.bf16.gmra.mxu0 %v1440
      %v1515 = vpop.f32.mrf.mxu0
      %v1516 = vadd.f32 0.0, %v1515
      %v1517 = vpop.f32.mrf.mxu0
      %v1518 = vpop.f32.mrf.mxu0
      %v1519 = vadd.f32 0.0, %v1518
      %v1520 = vpop.f32.mrf.mxu0
      %1521 = vmatprep.mubr.bf16.mxu0 0
      %1522 = vmatmul.mubr.bf16.gmra.mxu0 %v1443
      %v1523 = vpop.f32.mrf.mxu0
      %v1524 = vadd.f32 0.0, %v1523
      %v1525 = vpop.f32.mrf.mxu0
      %v1526 = vpop.f32.mrf.mxu0
      %v1527 = vadd.f32 0.0, %v1526
      %v1528 = vpop.f32.mrf.mxu0
      %1529 = vmatprep.mubr.bf16.mxu0 0
      %1530 = vmatmul.mubr.bf16.gmra.mxu0 %v1446
      %v1531 = vpop.f32.mrf.mxu0
      %v1532 = vadd.f32 0.0, %v1531
      %v1533 = vpop.f32.mrf.mxu0
      %v1534 = vpop.f32.mrf.mxu0
      %v1535 = vadd.f32 0.0, %v1534
      %v1536 = vpop.f32.mrf.mxu0
      %1537 = vmatprep.mubr.bf16.mxu0 0
      %1538 = vmatmul.mubr.bf16.gmra.mxu0 %v1449
      %v1539 = vpop.f32.mrf.mxu0
      %v1540 = vadd.f32 0.0, %v1539
      %v1541 = vpop.f32.mrf.mxu0
      %v1542 = vpop.f32.mrf.mxu0
      %v1543 = vadd.f32 0.0, %v1542
      %v1544 = vpop.f32.mrf.mxu0
      %1545 = vmatprep.mubr.bf16.mxu0 0
      %1546 = vmatmul.mubr.bf16.gmra.mxu0 %v1452
      %v1547 = vpop.f32.mrf.mxu0
      %v1548 = vadd.f32 0.0, %v1547
      %v1549 = vpop.f32.mrf.mxu0
      %v1550 = vpop.f32.mrf.mxu0
      %v1551 = vadd.f32 0.0, %v1550
      %v1552 = vpop.f32.mrf.mxu0
      %1553 = vdwg.mxu0
      %v1554 = vadd.f32 %v1172, %v1492
      %v1555 = vadd.f32 %v1173, %v1495
      %v1556 = vadd.f32 %v1174, %v1500
      %v1557 = vadd.f32 %v1175, %v1503
      %v1558 = vadd.f32 %v1176, %v1508
      %v1559 = vadd.f32 %v1177, %v1511
      %v1560 = vadd.f32 %v1178, %v1516
      %v1561 = vadd.f32 %v1179, %v1519
      %v1562 = vadd.f32 %v1180, %v1524
      %v1563 = vadd.f32 %v1181, %v1527
      %v1564 = vadd.f32 %v1182, %v1532
      %v1565 = vadd.f32 %v1183, %v1535
      %v1566 = vadd.f32 %v1184, %v1540
      %v1567 = vadd.f32 %v1185, %v1543
      %v1568 = vadd.f32 %v1186, %v1548
      %v1569 = vadd.f32 %v1187, %v1551
      %v1570 = vld [vmem:[%s989] sm:$0xe]
      %v1571 = vld [vmem:[%s989 + $0xc] sm:$0xe]
      %v1572 = vld [vmem:[%s989 + $0x18] sm:$0xe]
      %v1573 = vld [vmem:[%s989 + $0x24] sm:$0xe]
      %v1574 = vld [vmem:[%s989 + $0x30] sm:$0xe]
      %v1575 = vld [vmem:[%s989 + $0x3c] sm:$0xe]
      %v1576 = vld [vmem:[%s989 + $0x48] sm:$0xe]
      %v1577 = vld [vmem:[%s989 + $0x54] sm:$0xe]
      %v1602 = vrot.slane %v1570, 5
      %v1603 = vrot.slane %v1602, 4
      %v1604 = vrot.slane %v1189, 5
      %v1605 = vsel %vm763, %v1603, %v1604
      %v1606 = vrot.slane %v1604, 4
      %v1607 = vrot.slane %v1190, 5
      %v1608 = vsel %vm763, %v1606, %v1607
      %v1609 = vrot.slane %v1571, 5
      %v1610 = vrot.slane %v1609, 4
      %v1611 = vrot.slane %v1192, 5
      %v1612 = vsel %vm763, %v1610, %v1611
      %v1613 = vrot.slane %v1611, 4
      %v1614 = vrot.slane %v1193, 5
      %v1615 = vsel %vm763, %v1613, %v1614
      %v1616 = vrot.slane %v1572, 5
      %v1617 = vrot.slane %v1616, 4
      %v1618 = vrot.slane %v1195, 5
      %v1619 = vsel %vm763, %v1617, %v1618
      %v1620 = vrot.slane %v1618, 4
      %v1621 = vrot.slane %v1196, 5
      %v1622 = vsel %vm763, %v1620, %v1621
      %v1623 = vrot.slane %v1573, 5
      %v1624 = vrot.slane %v1623, 4
      %v1625 = vrot.slane %v1198, 5
      %v1626 = vsel %vm763, %v1624, %v1625
      %v1627 = vrot.slane %v1625, 4
      %v1628 = vrot.slane %v1199, 5
      %v1629 = vsel %vm763, %v1627, %v1628
      %v1630 = vrot.slane %v1574, 5
      %v1631 = vrot.slane %v1630, 4
      %v1632 = vrot.slane %v1201, 5
      %v1633 = vsel %vm763, %v1631, %v1632
      %v1634 = vrot.slane %v1632, 4
      %v1635 = vrot.slane %v1202, 5
      %v1636 = vsel %vm763, %v1634, %v1635
      %v1637 = vrot.slane %v1575, 5
      %v1638 = vrot.slane %v1637, 4
      %v1639 = vrot.slane %v1204, 5
      %v1640 = vsel %vm763, %v1638, %v1639
      %v1641 = vrot.slane %v1639, 4
      %v1642 = vrot.slane %v1205, 5
      %v1643 = vsel %vm763, %v1641, %v1642
      %v1644 = vrot.slane %v1576, 5
      %v1645 = vrot.slane %v1644, 4
      %v1646 = vrot.slane %v1207, 5
      %v1647 = vsel %vm763, %v1645, %v1646
      %v1648 = vrot.slane %v1646, 4
      %v1649 = vrot.slane %v1208, 5
      %v1650 = vsel %vm763, %v1648, %v1649
      %v1651 = vrot.slane %v1577, 5
      %v1652 = vrot.slane %v1651, 4
      %v1653 = vrot.slane %v1210, 5
      %v1654 = vsel %vm763, %v1652, %v1653
      %v1655 = vrot.slane %v1653, 4
      %v1656 = vrot.slane %v1211, 5
      %v1657 = vsel %vm763, %v1655, %v1656
      %s1658 = scalar_lea.vmem %s1, 10
      %v1659 = vld [vmem:[%s1658] sm:$0x3]
      %v1660 = vunpack.c.l.b16 %v1605
      %v1661 = vunpack.c.l.b16 %v1608
      %v1662 = vunpack.c.l.b16 %v1612
      %v1663 = vunpack.c.l.b16 %v1615
      %v1664 = vunpack.c.l.b16 %v1619
      %v1665 = vunpack.c.l.b16 %v1622
      %v1666 = vunpack.c.l.b16 %v1626
      %v1667 = vunpack.c.l.b16 %v1629
      %v1668 = vunpack.c.l.b16 %v1633
      %v1669 = vunpack.c.l.b16 %v1636
      %v1670 = vunpack.c.l.b16 %v1640
      %v1671 = vunpack.c.l.b16 %v1643
      %v1672 = vunpack.c.l.b16 %v1647
      %v1673 = vunpack.c.l.b16 %v1650
      %v1674 = vunpack.c.l.b16 %v1654
      %v1675 = vunpack.c.l.b16 %v1657
      %v1676 = vpack.c.b16 %v1661, %v1660
      %v1677 = vpack.c.b16 %v1663, %v1662
      %v1678 = vpack.c.b16 %v1665, %v1664
      %v1679 = vpack.c.b16 %v1667, %v1666
      %v1680 = vpack.c.b16 %v1669, %v1668
      %v1681 = vpack.c.b16 %v1671, %v1670
      %v1682 = vpack.c.b16 %v1673, %v1672
      %v1683 = vpack.c.b16 %v1675, %v1674
      %v1685 = vsel %vm447, %v1676, 0
      %v1688 = vsel %vm447, %v1677, 0
      %v1691 = vsel %vm447, %v1678, 0
      %v1694 = vsel %vm447, %v1679, 0
      %v1697 = vsel %vm447, %v1680, 0
      %v1700 = vsel %vm447, %v1681, 0
      %v1703 = vsel %vm447, %v1682, 0
      %v1706 = vsel %vm447, %v1683, 0
      %v1709 = vsel %vm472, %v1659, 0
      %1711 = vmatprep.subr.bf16.mxu0 0
      %1712 = vmatpush1.bf16.msra.mxu0 0
      %1713 = vmatprep.subr.bf16.mxu0 0
      %1714 = vmatpush1.bf16.msra.mxu0 0
      %1715 = vmatprep.subr.bf16.mxu0 0
      %1716 = vmatpush1.bf16.msra.mxu0 0
      %1717 = vmatprep.subr.bf16.mxu0 0
      %1718 = vmatpush1.bf16.msra.mxu0 0
      %1719 = vmatprep.subr.bf16.mxu0 0
      %1720 = vmatpush1.bf16.msra.mxu0 0
      %1721 = vmatprep.subr.bf16.mxu0 0
      %1722 = vmatpush1.bf16.msra.mxu0 0
      %1723 = vmatprep.subr.bf16.mxu0 0
      %1724 = vmatpush1.bf16.msra.mxu0 0
      %1725 = vmatprep.subr.bf16.mxu0 0
      %1726 = vmatpush1.bf16.msra.mxu0 %v1709
      %1727 = vmatprep.subr.bf16.mxu0 0
      %1728 = vmatpush2.bf16.msra.mxu0 0
      %1729 = vmatprep.subr.bf16.mxu0 0
      %1730 = vmatpush2.bf16.msra.mxu0 0
      %1731 = vmatprep.subr.bf16.mxu0 0
      %1732 = vmatpush2.bf16.msra.mxu0 0
      %1733 = vmatprep.subr.bf16.mxu0 0
      %1734 = vmatpush2.bf16.msra.mxu0 0
      %1735 = vmatprep.subr.bf16.mxu0 0
      %1736 = vmatpush2.bf16.msra.mxu0 0
      %1737 = vmatprep.subr.bf16.mxu0 0
      %1738 = vmatpush2.bf16.msra.mxu0 0
      %1739 = vmatprep.subr.bf16.mxu0 0
      %1740 = vmatpush2.bf16.msra.mxu0 0
      %1741 = vmatprep.subr.bf16.mxu0 0
      %1742 = vmatpush2.bf16.msra.mxu0 0
      %1743 = vmatprep.mubr.bf16.mxu0 0
      %1744 = vmatmul.mubr.bf16.gmra.mxu0 %v1685
      %v1745 = vpop.f32.mrf.mxu0
      %v1746 = vadd.f32 0.0, %v1745
      %v1747 = vpop.f32.mrf.mxu0
      %v1748 = vpop.f32.mrf.mxu0
      %v1749 = vadd.f32 0.0, %v1748
      %v1750 = vpop.f32.mrf.mxu0
      %1751 = vmatprep.mubr.bf16.mxu0 0
      %1752 = vmatmul.mubr.bf16.gmra.mxu0 %v1688
      %v1753 = vpop.f32.mrf.mxu0
      %v1754 = vadd.f32 0.0, %v1753
      %v1755 = vpop.f32.mrf.mxu0
      %v1756 = vpop.f32.mrf.mxu0
      %v1757 = vadd.f32 0.0, %v1756
      %v1758 = vpop.f32.mrf.mxu0
      %1759 = vmatprep.mubr.bf16.mxu0 0
      %1760 = vmatmul.mubr.bf16.gmra.mxu0 %v1691
      %v1761 = vpop.f32.mrf.mxu0
      %v1762 = vadd.f32 0.0, %v1761
      %v1763 = vpop.f32.mrf.mxu0
      %v1764 = vpop.f32.mrf.mxu0
      %v1765 = vadd.f32 0.0, %v1764
      %v1766 = vpop.f32.mrf.mxu0
      %1767 = vmatprep.mubr.bf16.mxu0 0
      %1768 = vmatmul.mubr.bf16.gmra.mxu0 %v1694
      %v1769 = vpop.f32.mrf.mxu0
      %v1770 = vadd.f32 0.0, %v1769
      %v1771 = vpop.f32.mrf.mxu0
      %v1772 = vpop.f32.mrf.mxu0
      %v1773 = vadd.f32 0.0, %v1772
      %v1774 = vpop.f32.mrf.mxu0
      %1775 = vmatprep.mubr.bf16.mxu0 0
      %1776 = vmatmul.mubr.bf16.gmra.mxu0 %v1697
      %v1777 = vpop.f32.mrf.mxu0
      %v1778 = vadd.f32 0.0, %v1777
      %v1779 = vpop.f32.mrf.mxu0
      %v1780 = vpop.f32.mrf.mxu0
      %v1781 = vadd.f32 0.0, %v1780
      %v1782 = vpop.f32.mrf.mxu0
      %1783 = vmatprep.mubr.bf16.mxu0 0
      %1784 = vmatmul.mubr.bf16.gmra.mxu0 %v1700
      %v1785 = vpop.f32.mrf.mxu0
      %v1786 = vadd.f32 0.0, %v1785
      %v1787 = vpop.f32.mrf.mxu0
      %v1788 = vpop.f32.mrf.mxu0
      %v1789 = vadd.f32 0.0, %v1788
      %v1790 = vpop.f32.mrf.mxu0
      %1791 = vmatprep.mubr.bf16.mxu0 0
      %1792 = vmatmul.mubr.bf16.gmra.mxu0 %v1703
      %v1793 = vpop.f32.mrf.mxu0
      %v1794 = vadd.f32 0.0, %v1793
      %v1795 = vpop.f32.mrf.mxu0
      %v1796 = vpop.f32.mrf.mxu0
      %v1797 = vadd.f32 0.0, %v1796
      %v1798 = vpop.f32.mrf.mxu0
      %1799 = vmatprep.mubr.bf16.mxu0 0
      %1800 = vmatmul.mubr.bf16.gmra.mxu0 %v1706
      %v1801 = vpop.f32.mrf.mxu0
      %v1802 = vadd.f32 0.0, %v1801
      %v1803 = vpop.f32.mrf.mxu0
      %v1804 = vpop.f32.mrf.mxu0
      %v1805 = vadd.f32 0.0, %v1804
      %v1806 = vpop.f32.mrf.mxu0
      %1807 = vdwg.mxu0
      %v1808 = vadd.f32 %v1554, %v1746
      %v1809 = vadd.f32 %v1555, %v1749
      %v1810 = vadd.f32 %v1556, %v1754
      %v1811 = vadd.f32 %v1557, %v1757
      %v1812 = vadd.f32 %v1558, %v1762
      %v1813 = vadd.f32 %v1559, %v1765
      %v1814 = vadd.f32 %v1560, %v1770
      %v1815 = vadd.f32 %v1561, %v1773
      %v1816 = vadd.f32 %v1562, %v1778
      %v1817 = vadd.f32 %v1563, %v1781
      %v1818 = vadd.f32 %v1564, %v1786
      %v1819 = vadd.f32 %v1565, %v1789
      %v1820 = vadd.f32 %v1566, %v1794
      %v1821 = vadd.f32 %v1567, %v1797
      %v1822 = vadd.f32 %v1568, %v1802
      %v1823 = vadd.f32 %v1569, %v1805
      %s1824 = sadd.s32 %s197, 2
      %s1825 = smul.u32 %s1824, 3
      %s1826 = smul.addr %s1825, 4
      %s1827 = scalar_lea.vmem %s184, %s1826
      %v1828 = vld [vmem:[%s1827] sm:$0xf]
      %v1829 = vld [vmem:[%s1827 + $0x4] sm:$0xf]
      %v1830 = vld [vmem:[%s1827 + $0xc] sm:$0xf]
      %v1831 = vld [vmem:[%s1827 + $0x10] sm:$0xf]
      %v1832 = vld [vmem:[%s1827 + $0x18] sm:$0xf]
      %v1833 = vld [vmem:[%s1827 + $0x1c] sm:$0xf]
      %v1834 = vld [vmem:[%s1827 + $0x24] sm:$0xf]
      %v1835 = vld [vmem:[%s1827 + $0x28] sm:$0xf]
      %v1836 = vld [vmem:[%s1827 + $0x30] sm:$0xf]
      %v1837 = vld [vmem:[%s1827 + $0x34] sm:$0xf]
      %v1838 = vld [vmem:[%s1827 + $0x3c] sm:$0xf]
      %v1839 = vld [vmem:[%s1827 + $0x40] sm:$0xf]
      %v1840 = vld [vmem:[%s1827 + $0x48] sm:$0xf]
      %v1841 = vld [vmem:[%s1827 + $0x4c] sm:$0xf]
      %v1842 = vld [vmem:[%s1827 + $0x54] sm:$0xf]
      %v1843 = vld [vmem:[%s1827 + $0x58] sm:$0xf]
      %s1844 = scalar_lea.vmem %s1, 12
      %v1845 = vld [vmem:[%s1844] sm:$0x3]
      %v1862 = vunpack.c.l.b16 %v1828
      %v1863 = vunpack.c.l.b16 %v1829
      %v1864 = vunpack.c.l.b16 %v1830
      %v1865 = vunpack.c.l.b16 %v1831
      %v1866 = vunpack.c.l.b16 %v1832
      %v1867 = vunpack.c.l.b16 %v1833
      %v1868 = vunpack.c.l.b16 %v1834
      %v1869 = vunpack.c.l.b16 %v1835
      %v1870 = vunpack.c.l.b16 %v1836
      %v1871 = vunpack.c.l.b16 %v1837
      %v1872 = vunpack.c.l.b16 %v1838
      %v1873 = vunpack.c.l.b16 %v1839
      %v1874 = vunpack.c.l.b16 %v1840
      %v1875 = vunpack.c.l.b16 %v1841
      %v1876 = vunpack.c.l.b16 %v1842
      %v1877 = vunpack.c.l.b16 %v1843
      %v1878 = vpack.c.b16 %v1863, %v1862
      %v1879 = vpack.c.b16 %v1865, %v1864
      %v1880 = vpack.c.b16 %v1867, %v1866
      %v1881 = vpack.c.b16 %v1869, %v1868
      %v1882 = vpack.c.b16 %v1871, %v1870
      %v1883 = vpack.c.b16 %v1873, %v1872
      %v1884 = vpack.c.b16 %v1875, %v1874
      %v1885 = vpack.c.b16 %v1877, %v1876
      %v1887 = vsel %vm447, %v1878, 0
      %v1890 = vsel %vm447, %v1879, 0
      %v1893 = vsel %vm447, %v1880, 0
      %v1896 = vsel %vm447, %v1881, 0
      %v1899 = vsel %vm447, %v1882, 0
      %v1902 = vsel %vm447, %v1883, 0
      %v1905 = vsel %vm447, %v1884, 0
      %v1908 = vsel %vm447, %v1885, 0
      %v1911 = vsel %vm472, %v1845, 0
      %1913 = vmatprep.subr.bf16.mxu0 0
      %1914 = vmatpush1.bf16.msra.mxu0 0
      %1915 = vmatprep.subr.bf16.mxu0 0
      %1916 = vmatpush1.bf16.msra.mxu0 0
      %1917 = vmatprep.subr.bf16.mxu0 0
      %1918 = vmatpush1.bf16.msra.mxu0 0
      %1919 = vmatprep.subr.bf16.mxu0 0
      %1920 = vmatpush1.bf16.msra.mxu0 0
      %1921 = vmatprep.subr.bf16.mxu0 0
      %1922 = vmatpush1.bf16.msra.mxu0 0
      %1923 = vmatprep.subr.bf16.mxu0 0
      %1924 = vmatpush1.bf16.msra.mxu0 0
      %1925 = vmatprep.subr.bf16.mxu0 0
      %1926 = vmatpush1.bf16.msra.mxu0 0
      %1927 = vmatprep.subr.bf16.mxu0 0
      %1928 = vmatpush1.bf16.msra.mxu0 %v1911
      %1929 = vmatprep.subr.bf16.mxu0 0
      %1930 = vmatpush2.bf16.msra.mxu0 0
      %1931 = vmatprep.subr.bf16.mxu0 0
      %1932 = vmatpush2.bf16.msra.mxu0 0
      %1933 = vmatprep.subr.bf16.mxu0 0
      %1934 = vmatpush2.bf16.msra.mxu0 0
      %1935 = vmatprep.subr.bf16.mxu0 0
      %1936 = vmatpush2.bf16.msra.mxu0 0
      %1937 = vmatprep.subr.bf16.mxu0 0
      %1938 = vmatpush2.bf16.msra.mxu0 0
      %1939 = vmatprep.subr.bf16.mxu0 0
      %1940 = vmatpush2.bf16.msra.mxu0 0
      %1941 = vmatprep.subr.bf16.mxu0 0
      %1942 = vmatpush2.bf16.msra.mxu0 0
      %1943 = vmatprep.subr.bf16.mxu0 0
      %1944 = vmatpush2.bf16.msra.mxu0 0
      %1945 = vmatprep.mubr.bf16.mxu0 0
      %1946 = vmatmul.mubr.bf16.gmra.mxu0 %v1887
      %v1947 = vpop.f32.mrf.mxu0
      %v1948 = vadd.f32 0.0, %v1947
      %v1949 = vpop.f32.mrf.mxu0
      %v1950 = vpop.f32.mrf.mxu0
      %v1951 = vadd.f32 0.0, %v1950
      %v1952 = vpop.f32.mrf.mxu0
      %1953 = vmatprep.mubr.bf16.mxu0 0
      %1954 = vmatmul.mubr.bf16.gmra.mxu0 %v1890
      %v1955 = vpop.f32.mrf.mxu0
      %v1956 = vadd.f32 0.0, %v1955
      %v1957 = vpop.f32.mrf.mxu0
      %v1958 = vpop.f32.mrf.mxu0
      %v1959 = vadd.f32 0.0, %v1958
      %v1960 = vpop.f32.mrf.mxu0
      %1961 = vmatprep.mubr.bf16.mxu0 0
      %1962 = vmatmul.mubr.bf16.gmra.mxu0 %v1893
      %v1963 = vpop.f32.mrf.mxu0
      %v1964 = vadd.f32 0.0, %v1963
      %v1965 = vpop.f32.mrf.mxu0
      %v1966 = vpop.f32.mrf.mxu0
      %v1967 = vadd.f32 0.0, %v1966
      %v1968 = vpop.f32.mrf.mxu0
      %1969 = vmatprep.mubr.bf16.mxu0 0
      %1970 = vmatmul.mubr.bf16.gmra.mxu0 %v1896
      %v1971 = vpop.f32.mrf.mxu0
      %v1972 = vadd.f32 0.0, %v1971
      %v1973 = vpop.f32.mrf.mxu0
      %v1974 = vpop.f32.mrf.mxu0
      %v1975 = vadd.f32 0.0, %v1974
      %v1976 = vpop.f32.mrf.mxu0
      %1977 = vmatprep.mubr.bf16.mxu0 0
      %1978 = vmatmul.mubr.bf16.gmra.mxu0 %v1899
      %v1979 = vpop.f32.mrf.mxu0
      %v1980 = vadd.f32 0.0, %v1979
      %v1981 = vpop.f32.mrf.mxu0
      %v1982 = vpop.f32.mrf.mxu0
      %v1983 = vadd.f32 0.0, %v1982
      %v1984 = vpop.f32.mrf.mxu0
      %1985 = vmatprep.mubr.bf16.mxu0 0
      %1986 = vmatmul.mubr.bf16.gmra.mxu0 %v1902
      %v1987 = vpop.f32.mrf.mxu0
      %v1988 = vadd.f32 0.0, %v1987
      %v1989 = vpop.f32.mrf.mxu0
      %v1990 = vpop.f32.mrf.mxu0
      %v1991 = vadd.f32 0.0, %v1990
      %v1992 = vpop.f32.mrf.mxu0
      %1993 = vmatprep.mubr.bf16.mxu0 0
      %1994 = vmatmul.mubr.bf16.gmra.mxu0 %v1905
      %v1995 = vpop.f32.mrf.mxu0
      %v1996 = vadd.f32 0.0, %v1995
      %v1997 = vpop.f32.mrf.mxu0
      %v1998 = vpop.f32.mrf.mxu0
      %v1999 = vadd.f32 0.0, %v1998
      %v2000 = vpop.f32.mrf.mxu0
      %2001 = vmatprep.mubr.bf16.mxu0 0
      %2002 = vmatmul.mubr.bf16.gmra.mxu0 %v1908
      %v2003 = vpop.f32.mrf.mxu0
      %v2004 = vadd.f32 0.0, %v2003
      %v2005 = vpop.f32.mrf.mxu0
      %v2006 = vpop.f32.mrf.mxu0
      %v2007 = vadd.f32 0.0, %v2006
      %v2008 = vpop.f32.mrf.mxu0
      %2009 = vdwg.mxu0
      %v2010 = vadd.f32 %v1808, %v1948
      %v2011 = vadd.f32 %v1809, %v1951
      %v2012 = vadd.f32 %v1810, %v1956
      %v2013 = vadd.f32 %v1811, %v1959
      %v2014 = vadd.f32 %v1812, %v1964
      %v2015 = vadd.f32 %v1813, %v1967
      %v2016 = vadd.f32 %v1814, %v1972
      %v2017 = vadd.f32 %v1815, %v1975
      %v2018 = vadd.f32 %v1816, %v1980
      %v2019 = vadd.f32 %v1817, %v1983
      %v2020 = vadd.f32 %v1818, %v1988
      %v2021 = vadd.f32 %v1819, %v1991
      %v2022 = vadd.f32 %v1820, %v1996
      %v2023 = vadd.f32 %v1821, %v1999
      %v2024 = vadd.f32 %v1822, %v2004
      %v2025 = vadd.f32 %v1823, %v2007
      %v2026 = vld [vmem:[%s1827] sm:$0xf]
      %v2027 = vld [vmem:[%s1827 + $0x4] sm:$0xf]
      %v2028 = vld [vmem:[%s1827 + $0x8] sm:$0x1]
      %v2029 = vld [vmem:[%s1827 + $0xc] sm:$0xf]
      %v2030 = vld [vmem:[%s1827 + $0x10] sm:$0xf]
      %v2031 = vld [vmem:[%s1827 + $0x14] sm:$0x1]
      %v2032 = vld [vmem:[%s1827 + $0x18] sm:$0xf]
      %v2033 = vld [vmem:[%s1827 + $0x1c] sm:$0xf]
      %v2034 = vld [vmem:[%s1827 + $0x20] sm:$0x1]
      %v2035 = vld [vmem:[%s1827 + $0x24] sm:$0xf]
      %v2036 = vld [vmem:[%s1827 + $0x28] sm:$0xf]
      %v2037 = vld [vmem:[%s1827 + $0x2c] sm:$0x1]
      %v2038 = vld [vmem:[%s1827 + $0x30] sm:$0xf]
      %v2039 = vld [vmem:[%s1827 + $0x34] sm:$0xf]
      %v2040 = vld [vmem:[%s1827 + $0x38] sm:$0x1]
      %v2041 = vld [vmem:[%s1827 + $0x3c] sm:$0xf]
      %v2042 = vld [vmem:[%s1827 + $0x40] sm:$0xf]
      %v2043 = vld [vmem:[%s1827 + $0x44] sm:$0x1]
      %v2044 = vld [vmem:[%s1827 + $0x48] sm:$0xf]
      %v2045 = vld [vmem:[%s1827 + $0x4c] sm:$0xf]
      %v2046 = vld [vmem:[%s1827 + $0x50] sm:$0x1]
      %v2047 = vld [vmem:[%s1827 + $0x54] sm:$0xf]
      %v2048 = vld [vmem:[%s1827 + $0x58] sm:$0xf]
      %v2049 = vld [vmem:[%s1827 + $0x5c] sm:$0x1]
      %v2051 = vshrl.u32 %v2026, 16
      %v2053 = vrot.slane %v2051, 4
      %v2054 = vshll.u32 %v2026, 16
      %v2056 = vrot.slane %v2054, 5
      %v2057 = vor.u32 %v2053, %v2056
      %v2058 = vrot.slane %v2057, 4
      %v2060 = vshll.u32 %v2027, 16
      %v2062 = vrot.slane %v2060, 5
      %v2063 = vsel %vm228, %v2058, %v2062
      %v2064 = vshrl.u32 %v2027, 16
      %v2066 = vrot.slane %v2064, 4
      %v2067 = vor.u32 %v2066, %v2062
      %v2068 = vrot.slane %v2067, 4
      %v2070 = vshll.u32 %v2028, 16
      %v2072 = vrot.slane %v2070, 5
      %v2073 = vsel %vm228, %v2068, %v2072
      %v2075 = vshrl.u32 %v2029, 16
      %v2077 = vrot.slane %v2075, 4
      %v2078 = vshll.u32 %v2029, 16
      %v2080 = vrot.slane %v2078, 5
      %v2081 = vor.u32 %v2077, %v2080
      %v2082 = vrot.slane %v2081, 4
      %v2084 = vshll.u32 %v2030, 16
      %v2086 = vrot.slane %v2084, 5
      %v2087 = vsel %vm228, %v2082, %v2086
      %v2088 = vshrl.u32 %v2030, 16
      %v2090 = vrot.slane %v2088, 4
      %v2091 = vor.u32 %v2090, %v2086
      %v2092 = vrot.slane %v2091, 4
      %v2094 = vshll.u32 %v2031, 16
      %v2096 = vrot.slane %v2094, 5
      %v2097 = vsel %vm228, %v2092, %v2096
      %v2099 = vshrl.u32 %v2032, 16
      %v2101 = vrot.slane %v2099, 4
      %v2102 = vshll.u32 %v2032, 16
      %v2104 = vrot.slane %v2102, 5
      %v2105 = vor.u32 %v2101, %v2104
      %v2106 = vrot.slane %v2105, 4
      %v2108 = vshll.u32 %v2033, 16
      %v2110 = vrot.slane %v2108, 5
      %v2111 = vsel %vm228, %v2106, %v2110
      %v2112 = vshrl.u32 %v2033, 16
      %v2114 = vrot.slane %v2112, 4
      %v2115 = vor.u32 %v2114, %v2110
      %v2116 = vrot.slane %v2115, 4
      %v2118 = vshll.u32 %v2034, 16
      %v2120 = vrot.slane %v2118, 5
      %v2121 = vsel %vm228, %v2116, %v2120
      %v2123 = vshrl.u32 %v2035, 16
      %v2125 = vrot.slane %v2123, 4
      %v2126 = vshll.u32 %v2035, 16
      %v2128 = vrot.slane %v2126, 5
      %v2129 = vor.u32 %v2125, %v2128
      %v2130 = vrot.slane %v2129, 4
      %v2132 = vshll.u32 %v2036, 16
      %v2134 = vrot.slane %v2132, 5
      %v2135 = vsel %vm228, %v2130, %v2134
      %v2136 = vshrl.u32 %v2036, 16
      %v2138 = vrot.slane %v2136, 4
      %v2139 = vor.u32 %v2138, %v2134
      %v2140 = vrot.slane %v2139, 4
      %v2142 = vshll.u32 %v2037, 16
      %v2144 = vrot.slane %v2142, 5
      %v2145 = vsel %vm228, %v2140, %v2144
      %v2147 = vshrl.u32 %v2038, 16
      %v2149 = vrot.slane %v2147, 4
      %v2150 = vshll.u32 %v2038, 16
      %v2152 = vrot.slane %v2150, 5
      %v2153 = vor.u32 %v2149, %v2152
      %v2154 = vrot.slane %v2153, 4
      %v2156 = vshll.u32 %v2039, 16
      %v2158 = vrot.slane %v2156, 5
      %v2159 = vsel %vm228, %v2154, %v2158
      %v2160 = vshrl.u32 %v2039, 16
      %v2162 = vrot.slane %v2160, 4
      %v2163 = vor.u32 %v2162, %v2158
      %v2164 = vrot.slane %v2163, 4
      %v2166 = vshll.u32 %v2040, 16
      %v2168 = vrot.slane %v2166, 5
      %v2169 = vsel %vm228, %v2164, %v2168
      %v2171 = vshrl.u32 %v2041, 16
      %v2173 = vrot.slane %v2171, 4
      %v2174 = vshll.u32 %v2041, 16
      %v2176 = vrot.slane %v2174, 5
      %v2177 = vor.u32 %v2173, %v2176
      %v2178 = vrot.slane %v2177, 4
      %v2180 = vshll.u32 %v2042, 16
      %v2182 = vrot.slane %v2180, 5
      %v2183 = vsel %vm228, %v2178, %v2182
      %v2184 = vshrl.u32 %v2042, 16
      %v2186 = vrot.slane %v2184, 4
      %v2187 = vor.u32 %v2186, %v2182
      %v2188 = vrot.slane %v2187, 4
      %v2190 = vshll.u32 %v2043, 16
      %v2192 = vrot.slane %v2190, 5
      %v2193 = vsel %vm228, %v2188, %v2192
      %v2195 = vshrl.u32 %v2044, 16
      %v2197 = vrot.slane %v2195, 4
      %v2198 = vshll.u32 %v2044, 16
      %v2200 = vrot.slane %v2198, 5
      %v2201 = vor.u32 %v2197, %v2200
      %v2202 = vrot.slane %v2201, 4
      %v2204 = vshll.u32 %v2045, 16
      %v2206 = vrot.slane %v2204, 5
      %v2207 = vsel %vm228, %v2202, %v2206
      %v2208 = vshrl.u32 %v2045, 16
      %v2210 = vrot.slane %v2208, 4
      %v2211 = vor.u32 %v2210, %v2206
      %v2212 = vrot.slane %v2211, 4
      %v2214 = vshll.u32 %v2046, 16
      %v2216 = vrot.slane %v2214, 5
      %v2217 = vsel %vm228, %v2212, %v2216
      %v2219 = vshrl.u32 %v2047, 16
      %v2221 = vrot.slane %v2219, 4
      %v2222 = vshll.u32 %v2047, 16
      %v2224 = vrot.slane %v2222, 5
      %v2225 = vor.u32 %v2221, %v2224
      %v2226 = vrot.slane %v2225, 4
      %v2228 = vshll.u32 %v2048, 16
      %v2230 = vrot.slane %v2228, 5
      %v2231 = vsel %vm228, %v2226, %v2230
      %v2232 = vshrl.u32 %v2048, 16
      %v2234 = vrot.slane %v2232, 4
      %v2235 = vor.u32 %v2234, %v2230
      %v2236 = vrot.slane %v2235, 4
      %v2238 = vshll.u32 %v2049, 16
      %v2240 = vrot.slane %v2238, 5
      %v2241 = vsel %vm228, %v2236, %v2240
      %s2242 = scalar_lea.vmem %s1, 14
      %v2243 = vld [vmem:[%s2242] sm:$0x3]
      %v2244 = vunpack.c.l.b16 %v2063
      %v2245 = vunpack.c.l.b16 %v2073
      %v2246 = vunpack.c.l.b16 %v2087
      %v2247 = vunpack.c.l.b16 %v2097
      %v2248 = vunpack.c.l.b16 %v2111
      %v2249 = vunpack.c.l.b16 %v2121
      %v2250 = vunpack.c.l.b16 %v2135
      %v2251 = vunpack.c.l.b16 %v2145
      %v2252 = vunpack.c.l.b16 %v2159
      %v2253 = vunpack.c.l.b16 %v2169
      %v2254 = vunpack.c.l.b16 %v2183
      %v2255 = vunpack.c.l.b16 %v2193
      %v2256 = vunpack.c.l.b16 %v2207
      %v2257 = vunpack.c.l.b16 %v2217
      %v2258 = vunpack.c.l.b16 %v2231
      %v2259 = vunpack.c.l.b16 %v2241
      %v2260 = vpack.c.b16 %v2245, %v2244
      %v2261 = vpack.c.b16 %v2247, %v2246
      %v2262 = vpack.c.b16 %v2249, %v2248
      %v2263 = vpack.c.b16 %v2251, %v2250
      %v2264 = vpack.c.b16 %v2253, %v2252
      %v2265 = vpack.c.b16 %v2255, %v2254
      %v2266 = vpack.c.b16 %v2257, %v2256
      %v2267 = vpack.c.b16 %v2259, %v2258
      %v2269 = vsel %vm447, %v2260, 0
      %v2272 = vsel %vm447, %v2261, 0
      %v2275 = vsel %vm447, %v2262, 0
      %v2278 = vsel %vm447, %v2263, 0
      %v2281 = vsel %vm447, %v2264, 0
      %v2284 = vsel %vm447, %v2265, 0
      %v2287 = vsel %vm447, %v2266, 0
      %v2290 = vsel %vm447, %v2267, 0
      %v2293 = vsel %vm472, %v2243, 0
      %2295 = vmatprep.subr.bf16.mxu0 0
      %2296 = vmatpush1.bf16.msra.mxu0 0
      %2297 = vmatprep.subr.bf16.mxu0 0
      %2298 = vmatpush1.bf16.msra.mxu0 0
      %2299 = vmatprep.subr.bf16.mxu0 0
      %2300 = vmatpush1.bf16.msra.mxu0 0
      %2301 = vmatprep.subr.bf16.mxu0 0
      %2302 = vmatpush1.bf16.msra.mxu0 0
      %2303 = vmatprep.subr.bf16.mxu0 0
      %2304 = vmatpush1.bf16.msra.mxu0 0
      %2305 = vmatprep.subr.bf16.mxu0 0
      %2306 = vmatpush1.bf16.msra.mxu0 0
      %2307 = vmatprep.subr.bf16.mxu0 0
      %2308 = vmatpush1.bf16.msra.mxu0 0
      %2309 = vmatprep.subr.bf16.mxu0 0
      %2310 = vmatpush1.bf16.msra.mxu0 %v2293
      %2311 = vmatprep.subr.bf16.mxu0 0
      %2312 = vmatpush2.bf16.msra.mxu0 0
      %2313 = vmatprep.subr.bf16.mxu0 0
      %2314 = vmatpush2.bf16.msra.mxu0 0
      %2315 = vmatprep.subr.bf16.mxu0 0
      %2316 = vmatpush2.bf16.msra.mxu0 0
      %2317 = vmatprep.subr.bf16.mxu0 0
      %2318 = vmatpush2.bf16.msra.mxu0 0
      %2319 = vmatprep.subr.bf16.mxu0 0
      %2320 = vmatpush2.bf16.msra.mxu0 0
      %2321 = vmatprep.subr.bf16.mxu0 0
      %2322 = vmatpush2.bf16.msra.mxu0 0
      %2323 = vmatprep.subr.bf16.mxu0 0
      %2324 = vmatpush2.bf16.msra.mxu0 0
      %2325 = vmatprep.subr.bf16.mxu0 0
      %2326 = vmatpush2.bf16.msra.mxu0 0
      %2327 = vmatprep.mubr.bf16.mxu0 0
      %2328 = vmatmul.mubr.bf16.gmra.mxu0 %v2269
      %v2329 = vpop.f32.mrf.mxu0
      %v2330 = vadd.f32 0.0, %v2329
      %v2331 = vpop.f32.mrf.mxu0
      %v2332 = vpop.f32.mrf.mxu0
      %v2333 = vadd.f32 0.0, %v2332
      %v2334 = vpop.f32.mrf.mxu0
      %2335 = vmatprep.mubr.bf16.mxu0 0
      %2336 = vmatmul.mubr.bf16.gmra.mxu0 %v2272
      %v2337 = vpop.f32.mrf.mxu0
      %v2338 = vadd.f32 0.0, %v2337
      %v2339 = vpop.f32.mrf.mxu0
      %v2340 = vpop.f32.mrf.mxu0
      %v2341 = vadd.f32 0.0, %v2340
      %v2342 = vpop.f32.mrf.mxu0
      %2343 = vmatprep.mubr.bf16.mxu0 0
      %2344 = vmatmul.mubr.bf16.gmra.mxu0 %v2275
      %v2345 = vpop.f32.mrf.mxu0
      %v2346 = vadd.f32 0.0, %v2345
      %v2347 = vpop.f32.mrf.mxu0
      %v2348 = vpop.f32.mrf.mxu0
      %v2349 = vadd.f32 0.0, %v2348
      %v2350 = vpop.f32.mrf.mxu0
      %2351 = vmatprep.mubr.bf16.mxu0 0
      %2352 = vmatmul.mubr.bf16.gmra.mxu0 %v2278
      %v2353 = vpop.f32.mrf.mxu0
      %v2354 = vadd.f32 0.0, %v2353
      %v2355 = vpop.f32.mrf.mxu0
      %v2356 = vpop.f32.mrf.mxu0
      %v2357 = vadd.f32 0.0, %v2356
      %v2358 = vpop.f32.mrf.mxu0
      %2359 = vmatprep.mubr.bf16.mxu0 0
      %2360 = vmatmul.mubr.bf16.gmra.mxu0 %v2281
      %v2361 = vpop.f32.mrf.mxu0
      %v2362 = vadd.f32 0.0, %v2361
      %v2363 = vpop.f32.mrf.mxu0
      %v2364 = vpop.f32.mrf.mxu0
      %v2365 = vadd.f32 0.0, %v2364
      %v2366 = vpop.f32.mrf.mxu0
      %2367 = vmatprep.mubr.bf16.mxu0 0
      %2368 = vmatmul.mubr.bf16.gmra.mxu0 %v2284
      %v2369 = vpop.f32.mrf.mxu0
      %v2370 = vadd.f32 0.0, %v2369
      %v2371 = vpop.f32.mrf.mxu0
      %v2372 = vpop.f32.mrf.mxu0
      %v2373 = vadd.f32 0.0, %v2372
      %v2374 = vpop.f32.mrf.mxu0
      %2375 = vmatprep.mubr.bf16.mxu0 0
      %2376 = vmatmul.mubr.bf16.gmra.mxu0 %v2287
      %v2377 = vpop.f32.mrf.mxu0
      %v2378 = vadd.f32 0.0, %v2377
      %v2379 = vpop.f32.mrf.mxu0
      %v2380 = vpop.f32.mrf.mxu0
      %v2381 = vadd.f32 0.0, %v2380
      %v2382 = vpop.f32.mrf.mxu0
      %2383 = vmatprep.mubr.bf16.mxu0 0
      %2384 = vmatmul.mubr.bf16.gmra.mxu0 %v2290
      %v2385 = vpop.f32.mrf.mxu0
      %v2386 = vadd.f32 0.0, %v2385
      %v2387 = vpop.f32.mrf.mxu0
      %v2388 = vpop.f32.mrf.mxu0
      %v2389 = vadd.f32 0.0, %v2388
      %v2390 = vpop.f32.mrf.mxu0
      %2391 = vdwg.mxu0
      %v2392 = vadd.f32 %v2010, %v2330
      %v2393 = vadd.f32 %v2011, %v2333
      %v2394 = vadd.f32 %v2012, %v2338
      %v2395 = vadd.f32 %v2013, %v2341
      %v2396 = vadd.f32 %v2014, %v2346
      %v2397 = vadd.f32 %v2015, %v2349
      %v2398 = vadd.f32 %v2016, %v2354
      %v2399 = vadd.f32 %v2017, %v2357
      %v2400 = vadd.f32 %v2018, %v2362
      %v2401 = vadd.f32 %v2019, %v2365
      %v2402 = vadd.f32 %v2020, %v2370
      %v2403 = vadd.f32 %v2021, %v2373
      %v2404 = vadd.f32 %v2022, %v2378
      %v2405 = vadd.f32 %v2023, %v2381
      %v2406 = vadd.f32 %v2024, %v2386
      %v2407 = vadd.f32 %v2025, %v2389
      %v2408 = vld [vmem:[%s1827] sm:$0xe]
      %v2409 = vld [vmem:[%s1827 + $0xc] sm:$0xe]
      %v2410 = vld [vmem:[%s1827 + $0x18] sm:$0xe]
      %v2411 = vld [vmem:[%s1827 + $0x24] sm:$0xe]
      %v2412 = vld [vmem:[%s1827 + $0x30] sm:$0xe]
      %v2413 = vld [vmem:[%s1827 + $0x3c] sm:$0xe]
      %v2414 = vld [vmem:[%s1827 + $0x48] sm:$0xe]
      %v2415 = vld [vmem:[%s1827 + $0x54] sm:$0xe]
      %v2440 = vrot.slane %v2408, 5
      %v2441 = vrot.slane %v2440, 4
      %v2442 = vrot.slane %v2027, 5
      %v2443 = vsel %vm763, %v2441, %v2442
      %v2444 = vrot.slane %v2442, 4
      %v2445 = vrot.slane %v2028, 5
      %v2446 = vsel %vm763, %v2444, %v2445
      %v2447 = vrot.slane %v2409, 5
      %v2448 = vrot.slane %v2447, 4
      %v2449 = vrot.slane %v2030, 5
      %v2450 = vsel %vm763, %v2448, %v2449
      %v2451 = vrot.slane %v2449, 4
      %v2452 = vrot.slane %v2031, 5
      %v2453 = vsel %vm763, %v2451, %v2452
      %v2454 = vrot.slane %v2410, 5
      %v2455 = vrot.slane %v2454, 4
      %v2456 = vrot.slane %v2033, 5
      %v2457 = vsel %vm763, %v2455, %v2456
      %v2458 = vrot.slane %v2456, 4
      %v2459 = vrot.slane %v2034, 5
      %v2460 = vsel %vm763, %v2458, %v2459
      %v2461 = vrot.slane %v2411, 5
      %v2462 = vrot.slane %v2461, 4
      %v2463 = vrot.slane %v2036, 5
      %v2464 = vsel %vm763, %v2462, %v2463
      %v2465 = vrot.slane %v2463, 4
      %v2466 = vrot.slane %v2037, 5
      %v2467 = vsel %vm763, %v2465, %v2466
      %v2468 = vrot.slane %v2412, 5
      %v2469 = vrot.slane %v2468, 4
      %v2470 = vrot.slane %v2039, 5
      %v2471 = vsel %vm763, %v2469, %v2470
      %v2472 = vrot.slane %v2470, 4
      %v2473 = vrot.slane %v2040, 5
      %v2474 = vsel %vm763, %v2472, %v2473
      %v2475 = vrot.slane %v2413, 5
      %v2476 = vrot.slane %v2475, 4
      %v2477 = vrot.slane %v2042, 5
      %v2478 = vsel %vm763, %v2476, %v2477
      %v2479 = vrot.slane %v2477, 4
      %v2480 = vrot.slane %v2043, 5
      %v2481 = vsel %vm763, %v2479, %v2480
      %v2482 = vrot.slane %v2414, 5
      %v2483 = vrot.slane %v2482, 4
      %v2484 = vrot.slane %v2045, 5
      %v2485 = vsel %vm763, %v2483, %v2484
      %v2486 = vrot.slane %v2484, 4
      %v2487 = vrot.slane %v2046, 5
      %v2488 = vsel %vm763, %v2486, %v2487
      %v2489 = vrot.slane %v2415, 5
      %v2490 = vrot.slane %v2489, 4
      %v2491 = vrot.slane %v2048, 5
      %v2492 = vsel %vm763, %v2490, %v2491
      %v2493 = vrot.slane %v2491, 4
      %v2494 = vrot.slane %v2049, 5
      %v2495 = vsel %vm763, %v2493, %v2494
      %s2496 = scalar_lea.vmem %s1, 16
      %v2497 = vld [vmem:[%s2496] sm:$0x3]
      %v2498 = vunpack.c.l.b16 %v2443
      %v2499 = vunpack.c.l.b16 %v2446
      %v2500 = vunpack.c.l.b16 %v2450
      %v2501 = vunpack.c.l.b16 %v2453
      %v2502 = vunpack.c.l.b16 %v2457
      %v2503 = vunpack.c.l.b16 %v2460
      %v2504 = vunpack.c.l.b16 %v2464
      %v2505 = vunpack.c.l.b16 %v2467
      %v2506 = vunpack.c.l.b16 %v2471
      %v2507 = vunpack.c.l.b16 %v2474
      %v2508 = vunpack.c.l.b16 %v2478
      %v2509 = vunpack.c.l.b16 %v2481
      %v2510 = vunpack.c.l.b16 %v2485
      %v2511 = vunpack.c.l.b16 %v2488
      %v2512 = vunpack.c.l.b16 %v2492
      %v2513 = vunpack.c.l.b16 %v2495
      %v2514 = vpack.c.b16 %v2499, %v2498
      %v2515 = vpack.c.b16 %v2501, %v2500
      %v2516 = vpack.c.b16 %v2503, %v2502
      %v2517 = vpack.c.b16 %v2505, %v2504
      %v2518 = vpack.c.b16 %v2507, %v2506
      %v2519 = vpack.c.b16 %v2509, %v2508
      %v2520 = vpack.c.b16 %v2511, %v2510
      %v2521 = vpack.c.b16 %v2513, %v2512
      %v2523 = vsel %vm447, %v2514, 0
      %v2526 = vsel %vm447, %v2515, 0
      %v2529 = vsel %vm447, %v2516, 0
      %v2532 = vsel %vm447, %v2517, 0
      %v2535 = vsel %vm447, %v2518, 0
      %v2538 = vsel %vm447, %v2519, 0
      %v2541 = vsel %vm447, %v2520, 0
      %v2544 = vsel %vm447, %v2521, 0
      %v2547 = vsel %vm472, %v2497, 0
      %2549 = vmatprep.subr.bf16.mxu0 0
      %2550 = vmatpush1.bf16.msra.mxu0 0
      %2551 = vmatprep.subr.bf16.mxu0 0
      %2552 = vmatpush1.bf16.msra.mxu0 0
      %2553 = vmatprep.subr.bf16.mxu0 0
      %2554 = vmatpush1.bf16.msra.mxu0 0
      %2555 = vmatprep.subr.bf16.mxu0 0
      %2556 = vmatpush1.bf16.msra.mxu0 0
      %2557 = vmatprep.subr.bf16.mxu0 0
      %2558 = vmatpush1.bf16.msra.mxu0 0
      %2559 = vmatprep.subr.bf16.mxu0 0
      %2560 = vmatpush1.bf16.msra.mxu0 0
      %2561 = vmatprep.subr.bf16.mxu0 0
      %2562 = vmatpush1.bf16.msra.mxu0 0
      %2563 = vmatprep.subr.bf16.mxu0 0
      %2564 = vmatpush1.bf16.msra.mxu0 %v2547
      %2565 = vmatprep.subr.bf16.mxu0 0
      %2566 = vmatpush2.bf16.msra.mxu0 0
      %2567 = vmatprep.subr.bf16.mxu0 0
      %2568 = vmatpush2.bf16.msra.mxu0 0
      %2569 = vmatprep.subr.bf16.mxu0 0
      %2570 = vmatpush2.bf16.msra.mxu0 0
      %2571 = vmatprep.subr.bf16.mxu0 0
      %2572 = vmatpush2.bf16.msra.mxu0 0
      %2573 = vmatprep.subr.bf16.mxu0 0
      %2574 = vmatpush2.bf16.msra.mxu0 0
      %2575 = vmatprep.subr.bf16.mxu0 0
      %2576 = vmatpush2.bf16.msra.mxu0 0
      %2577 = vmatprep.subr.bf16.mxu0 0
      %2578 = vmatpush2.bf16.msra.mxu0 0
      %2579 = vmatprep.subr.bf16.mxu0 0
      %2580 = vmatpush2.bf16.msra.mxu0 0
      %2581 = vmatprep.mubr.bf16.mxu0 0
      %2582 = vmatmul.mubr.bf16.gmra.mxu0 %v2523
      %v2583 = vpop.f32.mrf.mxu0
      %v2584 = vadd.f32 0.0, %v2583
      %v2585 = vpop.f32.mrf.mxu0
      %v2586 = vpop.f32.mrf.mxu0
      %v2587 = vadd.f32 0.0, %v2586
      %v2588 = vpop.f32.mrf.mxu0
      %2589 = vmatprep.mubr.bf16.mxu0 0
      %2590 = vmatmul.mubr.bf16.gmra.mxu0 %v2526
      %v2591 = vpop.f32.mrf.mxu0
      %v2592 = vadd.f32 0.0, %v2591
      %v2593 = vpop.f32.mrf.mxu0
      %v2594 = vpop.f32.mrf.mxu0
      %v2595 = vadd.f32 0.0, %v2594
      %v2596 = vpop.f32.mrf.mxu0
      %2597 = vmatprep.mubr.bf16.mxu0 0
      %2598 = vmatmul.mubr.bf16.gmra.mxu0 %v2529
      %v2599 = vpop.f32.mrf.mxu0
      %v2600 = vadd.f32 0.0, %v2599
      %v2601 = vpop.f32.mrf.mxu0
      %v2602 = vpop.f32.mrf.mxu0
      %v2603 = vadd.f32 0.0, %v2602
      %v2604 = vpop.f32.mrf.mxu0
      %2605 = vmatprep.mubr.bf16.mxu0 0
      %2606 = vmatmul.mubr.bf16.gmra.mxu0 %v2532
      %v2607 = vpop.f32.mrf.mxu0
      %v2608 = vadd.f32 0.0, %v2607
      %v2609 = vpop.f32.mrf.mxu0
      %v2610 = vpop.f32.mrf.mxu0
      %v2611 = vadd.f32 0.0, %v2610
      %v2612 = vpop.f32.mrf.mxu0
      %2613 = vmatprep.mubr.bf16.mxu0 0
      %2614 = vmatmul.mubr.bf16.gmra.mxu0 %v2535
      %v2615 = vpop.f32.mrf.mxu0
      %v2616 = vadd.f32 0.0, %v2615
      %v2617 = vpop.f32.mrf.mxu0
      %v2618 = vpop.f32.mrf.mxu0
      %v2619 = vadd.f32 0.0, %v2618
      %v2620 = vpop.f32.mrf.mxu0
      %2621 = vmatprep.mubr.bf16.mxu0 0
      %2622 = vmatmul.mubr.bf16.gmra.mxu0 %v2538
      %v2623 = vpop.f32.mrf.mxu0
      %v2624 = vadd.f32 0.0, %v2623
      %v2625 = vpop.f32.mrf.mxu0
      %v2626 = vpop.f32.mrf.mxu0
      %v2627 = vadd.f32 0.0, %v2626
      %v2628 = vpop.f32.mrf.mxu0
      %2629 = vmatprep.mubr.bf16.mxu0 0
      %2630 = vmatmul.mubr.bf16.gmra.mxu0 %v2541
      %v2631 = vpop.f32.mrf.mxu0
      %v2632 = vadd.f32 0.0, %v2631
      %v2633 = vpop.f32.mrf.mxu0
      %v2634 = vpop.f32.mrf.mxu0
      %v2635 = vadd.f32 0.0, %v2634
      %v2636 = vpop.f32.mrf.mxu0
      %2637 = vmatprep.mubr.bf16.mxu0 0
      %2638 = vmatmul.mubr.bf16.gmra.mxu0 %v2544
      %v2639 = vpop.f32.mrf.mxu0
      %v2640 = vadd.f32 0.0, %v2639
      %v2641 = vpop.f32.mrf.mxu0
      %v2642 = vpop.f32.mrf.mxu0
      %v2643 = vadd.f32 0.0, %v2642
      %v2644 = vpop.f32.mrf.mxu0
      %2645 = vdwg.mxu0
      %v2646 = vadd.f32 %v2392, %v2584
      %v2647 = vadd.f32 %v2393, %v2587
      %v2648 = vadd.f32 %v2394, %v2592
      %v2649 = vadd.f32 %v2395, %v2595
      %v2650 = vadd.f32 %v2396, %v2600
      %v2651 = vadd.f32 %v2397, %v2603
      %v2652 = vadd.f32 %v2398, %v2608
      %v2653 = vadd.f32 %v2399, %v2611
      %v2654 = vadd.f32 %v2400, %v2616
      %v2655 = vadd.f32 %v2401, %v2619
      %v2656 = vadd.f32 %v2402, %v2624
      %v2657 = vadd.f32 %v2403, %v2627
      %v2658 = vadd.f32 %v2404, %v2632
      %v2659 = vadd.f32 %v2405, %v2635
      %v2660 = vadd.f32 %v2406, %v2640
      %v2661 = vadd.f32 %v2407, %v2643
      %v2662 = vld [vmem:[%s2] sm:$0x1]
      %v2664 = vlaneseq
      %v2665 = vshrl.u32 %v2664, 7
      %v2666 = vsub.s32 0, %v2665
      %v2667 = vrot.slane %v2662, %v2666
      %v2669 = vadd.f32 %v2646, %v2667
      %v2670 = vadd.f32 %v2647, %v2667
      %v2671 = vadd.f32 %v2648, %v2667
      %v2672 = vadd.f32 %v2649, %v2667
      %v2673 = vadd.f32 %v2650, %v2667
      %v2674 = vadd.f32 %v2651, %v2667
      %v2675 = vadd.f32 %v2652, %v2667
      %v2676 = vadd.f32 %v2653, %v2667
      %v2677 = vadd.f32 %v2654, %v2667
      %v2678 = vadd.f32 %v2655, %v2667
      %v2679 = vadd.f32 %v2656, %v2667
      %v2680 = vadd.f32 %v2657, %v2667
      %v2681 = vadd.f32 %v2658, %v2667
      %v2682 = vadd.f32 %v2659, %v2667
      %v2683 = vadd.f32 %v2660, %v2667
      %v2684 = vadd.f32 %v2661, %v2667
      %2701 = vrot.lane.b32.xlu0 %v2669, 112
      %v2702 = vpop.permute.xlu0 %2701
      %2703 = vrot.lane.b32.xlu0 %v2670, 112
      %v2704 = vpop.permute.xlu0 %2703
      %2705 = vrot.lane.b32.xlu0 %v2671, 112
      %v2706 = vpop.permute.xlu0 %2705
      %2707 = vrot.lane.b32.xlu0 %v2672, 112
      %v2708 = vpop.permute.xlu0 %2707
      %2709 = vrot.lane.b32.xlu0 %v2673, 112
      %v2710 = vpop.permute.xlu0 %2709
      %2711 = vrot.lane.b32.xlu0 %v2674, 112
      %v2712 = vpop.permute.xlu0 %2711
      %2713 = vrot.lane.b32.xlu0 %v2675, 112
      %v2714 = vpop.permute.xlu0 %2713
      %2715 = vrot.lane.b32.xlu0 %v2676, 112
      %v2716 = vpop.permute.xlu0 %2715
      %2717 = vrot.lane.b32.xlu0 %v2677, 112
      %v2718 = vpop.permute.xlu0 %2717
      %2719 = vrot.lane.b32.xlu0 %v2678, 112
      %v2720 = vpop.permute.xlu0 %2719
      %2721 = vrot.lane.b32.xlu0 %v2679, 112
      %v2722 = vpop.permute.xlu0 %2721
      %2723 = vrot.lane.b32.xlu0 %v2680, 112
      %v2724 = vpop.permute.xlu0 %2723
      %2725 = vrot.lane.b32.xlu0 %v2681, 112
      %v2726 = vpop.permute.xlu0 %2725
      %2727 = vrot.lane.b32.xlu0 %v2682, 112
      %v2728 = vpop.permute.xlu0 %2727
      %2729 = vrot.lane.b32.xlu0 %v2683, 112
      %v2730 = vpop.permute.xlu0 %2729
      %2731 = vrot.lane.b32.xlu0 %v2684, 112
      %v2732 = vpop.permute.xlu0 %2731
      %v2749 = vmax.f32 %v2669, %v2702
      %v2750 = vmax.f32 %v2670, %v2704
      %v2751 = vmax.f32 %v2671, %v2706
      %v2752 = vmax.f32 %v2672, %v2708
      %v2753 = vmax.f32 %v2673, %v2710
      %v2754 = vmax.f32 %v2674, %v2712
      %v2755 = vmax.f32 %v2675, %v2714
      %v2756 = vmax.f32 %v2676, %v2716
      %v2757 = vmax.f32 %v2677, %v2718
      %v2758 = vmax.f32 %v2678, %v2720
      %v2759 = vmax.f32 %v2679, %v2722
      %v2760 = vmax.f32 %v2680, %v2724
      %v2761 = vmax.f32 %v2681, %v2726
      %v2762 = vmax.f32 %v2682, %v2728
      %v2763 = vmax.f32 %v2683, %v2730
      %v2764 = vmax.f32 %v2684, %v2732
      %vm2765 = vcmask 130048
      %2766 = vst.msk [vmem:[%s194] sm:$0xff] %vm2765, %v2749
      %2767 = vst.msk [vmem:[%s194 + $0x8] sm:$0xff] %vm2765, %v2750
      %2768 = vst.msk [vmem:[%s194 + $0x10] sm:$0xff] %vm2765, %v2751
      %2769 = vst.msk [vmem:[%s194 + $0x18] sm:$0xff] %vm2765, %v2752
      %2770 = vst.msk [vmem:[%s194 + $0x20] sm:$0xff] %vm2765, %v2753
      %2771 = vst.msk [vmem:[%s194 + $0x28] sm:$0xff] %vm2765, %v2754
      %2772 = vst.msk [vmem:[%s194 + $0x30] sm:$0xff] %vm2765, %v2755
      %2773 = vst.msk [vmem:[%s194 + $0x38] sm:$0xff] %vm2765, %v2756
      %2774 = vst.msk [vmem:[%s194 + $0x40] sm:$0xff] %vm2765, %v2757
      %2775 = vst.msk [vmem:[%s194 + $0x48] sm:$0xff] %vm2765, %v2758
      %2776 = vst.msk [vmem:[%s194 + $0x50] sm:$0xff] %vm2765, %v2759
      %2777 = vst.msk [vmem:[%s194 + $0x58] sm:$0xff] %vm2765, %v2760
      %2778 = vst.msk [vmem:[%s194 + $0x60] sm:$0xff] %vm2765, %v2761
      %2779 = vst.msk [vmem:[%s194 + $0x68] sm:$0xff] %vm2765, %v2762
      %2780 = vst.msk [vmem:[%s194 + $0x70] sm:$0xff] %vm2765, %v2763
      %2781 = vst.msk [vmem:[%s194 + $0x78] sm:$0xff] %vm2765, %v2764
      %s2782 = smul.u32 8, %s19
      %p2783 = scmp.lt.s32.totalorder %s18, 1
      %s2784 = scalar_select %p2783, %s18, 1
      %p2785 = scmp.lt.s32.totalorder %s2782, 15
      %s2786 = scalar_select %p2785, %s2782, 15
      %s2787 = smul.addr %s2786, 2
      %s2788 = smul.addr %s2784, 32
      %s2789 = sadd.s32 %s2787, %s2788
      %s2790 = smul.addr %s2789, 8
      %s2791 = scalar_lea.vmem %s3, %s2790
      // Predicated region
      $region33: #{mfm_conv.1} parent=31 // pred_check
        %p2792 = pneg %p114
      $region34: #{mfm_conv.1} parent=31 // pred_check_branch
        %2794 = sbr.rel (%p2792) target = $region36
      $region35: #{mfm_conv.1} parent=31 // pred_region
        %s2795 = smul.u32 8, %s19
      $region36: #{mfm_conv.1} parent=31 // pred_fallthru
        _
    $region32: #{mfm_conv.1} parent=5 // pred_fallthru
      _
    %p2796 = scmp.le.s32.totalorder 2, %s9
    // Predicated region
    $region37: #{mfm_conv.1} parent=5 // pred_check
      %p2797 = pneg %p2796
    $region38: #{mfm_conv.1} parent=5 // pred_check_branch
      %2799 = sbr.rel (%p2797) target = $region40
    $region39: #{mfm_conv.1} parent=5 // pred_region
      %s2800 = ssub.s32 %s9, 2
      // Predicated region
      $region41: #{mfm_conv.1} parent=39 // pred_check
        %p2801 = pneg %p120
      $region42: #{mfm_conv.1} parent=39 // pred_check_branch
        %2803 = sbr.rel (%p2801) target = $region44
      $region43: #{mfm_conv.1} parent=39 // pred_region
        %s2804 = smul.u32 8, %s21
        %p2805 = scmp.lt.s32.totalorder %s20, 1
        %s2806 = scalar_select %p2805, %s20, 1
        %p2807 = scmp.lt.s32.totalorder %s2804, 15
        %s2808 = scalar_select %p2807, %s2804, 15
        %s2809 = smul.addr %s2808, 2
        %s2810 = smul.addr %s2806, 32
        %s2811 = sadd.s32 %s2809, %s2810
        %s2812 = smul.addr %s2811, 8
        %s2813 = scalar_lea.vmem %s3, %s2812
      $region44: #{mfm_conv.1} parent=39 // pred_fallthru
        _
    $region40: #{mfm_conv.1} parent=5 // pred_fallthru
      _
  $region6: #{mfm_conv.1} parent=0 // loop_footer
    %s13 = sadd.s32 1, %s9
  $region7: #{mfm_conv.1} parent=0 // loop_footer_branch
    %8 = sbr.rel target = $region3
  $region8: #{mfm_conv.1} parent=0 // loop_exit
    _

</llo_original>
